<compile_context>
chip_gen: v6e
topology: v6e:2x2x1
jax: 0.10.0
libtpu: 0.0.40
codegen_flags: <defaults>
</compile_context>

<pallas_src>
import functools

import jax
import jax.numpy as jnp
from jax.experimental import pallas as pl
from jax.experimental.pallas import tpu as pltpu


def _round_up(x, m):
    return (x + m - 1) // m * m


def _largest_tile(n, candidates):
    for c in candidates:
        if c <= n and n % c == 0:
            return c
    return n


def _tpu_vmem_capacity_bytes():
    """Generation-aware VMEM capacity (64 MiB on v7x, 128 MiB on v5e/v6e)."""
    try:
        return int(pltpu.get_tpu_info().vmem_capacity_bytes)
    except Exception:
        return 64 * 1024 * 1024  # conservative fallback, valid on every generation


def _vmem_limit(request_bytes, capacity_bytes):
    usable = int(capacity_bytes * 0.9)
    return int(min(max(int(request_bytes * 1.25), 16 * 1024 * 1024), usable))


# ---------------------------------------------------------------------------
# Phase 1: DMA-gather the context embedding rows from HBM and average them.
# ---------------------------------------------------------------------------
def _avg_embed_kernel(C, inv_c, idx_ref, emb_hbm, avg_ref, rows, sems):
    """One grid step = one batch tile of TB output rows.

    idx_ref : SMEM (Bp*C,) int32       -- scalar-prefetched token ids (row-major)
    emb_hbm : ANY  (V, Dp)             -- embedding table, stays in HBM
    avg_ref : VMEM (TB, Dp)            -- mean context embedding (output tile)
    rows    : VMEM (C*TB, Dp) scratch  -- gathered rows, context-major layout
    sems    : DMA semaphores, one per gathered row
    """
    TB = avg_ref.shape[0]
    base = pl.program_id(0) * (TB * C)

    # Issue all TB*C row DMAs for this tile; they proceed concurrently.
    copies = []
    for c in range(C):
        for r in range(TB):
            j = c * TB + r
            row_id = idx_ref[base + r * C + c]
            cp = pltpu.make_async_copy(
                emb_hbm.at[pl.ds(row_id, 1), :],
                rows.at[pl.ds(j, 1), :],
                sems.at[j],
            )
            cp.start()
            copies.append(cp)
    for cp in copies:
        cp.wait()

    # Sublane-dense reduction: C full-width (TB, Dp) adds, one (TB, Dp) store.
    acc = rows[pl.ds(0, TB), :].astype(jnp.float32)
    for c in range(1, C):
        acc = acc + rows[pl.ds(c * TB, TB), :].astype(jnp.float32)
    avg_ref[...] = (acc * inv_c).astype(avg_ref.dtype)


# ---------------------------------------------------------------------------
# Phase 2: logits = avg_embeds @ W^T + bias   (weight pre-transposed to (D, V))
# ---------------------------------------------------------------------------
def _logits_kernel(avg_ref, w_ref, bias_ref, out_ref):
    out_ref[...] = (
        jnp.dot(avg_ref[...], w_ref[...], preferred_element_type=jnp.float32)
        + bias_ref[...]
    )


def cbow_forward(idx, emb, weight, bias, *, stream_dtype=jnp.bfloat16):
    """idx: (B, C) int; emb: (V, D) f32; weight: (V, D) f32 (PyTorch Linear layout); bias: (V,)."""
    B, C = idx.shape
    V, D = emb.shape
    assert weight.shape == (V, D) and bias.shape == (V,)

    sb = jnp.dtype(stream_dtype).itemsize
    cap = _tpu_vmem_capacity_bytes()

    # --- tiling / padding plan ------------------------------------------------
    Dp = _round_up(max(D, 128), 128)

    # Batch: a single tile whenever it fits, so the weight streams from HBM once.
    B8 = _round_up(max(B, 8), 8)
    TB2 = B8 if B8 <= 512 else 512
    Bp = _round_up(B8, TB2)

    # Vocab tile: as large as the VMEM budget allows (bigger streaming DMAs,
    # fewer grid steps), lane-dense, never larger than the padded vocab itself.
    V128 = _round_up(max(V, 128), 128)
    TV = 128
    for cand in (2048, 1024, 512, 256, 128):
        if cand > V128:
            continue
        req = 2 * (TB2 * Dp * sb + Dp * cand * sb + cand * 4 + TB2 * cand * 4)
        if req <= int(cap * 0.6):
            TV = cand
            break
    Vp = _round_up(V, TV)

    # Phase-1 batch tile: small, so each grid step issues at most ~128 row DMAs.
    tb1_cap = max(8, min(32, 128 // max(C, 1)))
    TB1 = _largest_tile(Bp, tuple(t for t in (32, 16, 8) if t <= tb1_cap))

    # --- operand prep (pad + cast; one-time wrapper cost for parameters) ------
    f32 = jnp.float32
    emb_p = jnp.pad(emb.astype(f32), ((0, 0), (0, Dp - D))).astype(stream_dtype)            # (V, Dp)
    w_t_p = jnp.pad(weight.astype(f32).T, ((0, Dp - D), (0, Vp - V))).astype(stream_dtype)  # (Dp, Vp)
    bias_p = jnp.pad(bias.astype(f32), (0, Vp - V)).reshape(1, Vp)                          # (1, Vp)
    idx_p = jnp.pad(idx.astype(jnp.int32), ((0, Bp - B), (0, 0))).reshape(-1)               # (Bp*C,)

    # --- phase 1: gather + mean ------------------------------------------------
    vmem1 = _vmem_limit(C * TB1 * Dp * sb + 2 * TB1 * Dp * sb + 64 * 1024, cap)
    avg_p = pl.pallas_call(
        functools.partial(_avg_embed_kernel, C, 1.0 / C),
        out_shape=jax.ShapeDtypeStruct((Bp, Dp), stream_dtype),
        grid_spec=pltpu.PrefetchScalarGridSpec(
            num_scalar_prefetch=1,                         # idx -> SMEM
            grid=(Bp // TB1,),
            in_specs=[pl.BlockSpec(memory_space=pl.ANY)],  # embedding table stays in HBM
            out_specs=pl.BlockSpec((TB1, Dp), lambda b, idx: (b, 0)),
            scratch_shapes=[
                pltpu.VMEM((C * TB1, Dp), stream_dtype),
                pltpu.SemaphoreType.DMA((C * TB1,)),
            ],
        ),
        compiler_params=pltpu.CompilerParams(
            dimension_semantics=("parallel",),
            vmem_limit_bytes=vmem1,
        ),
    )(idx_p, emb_p)
    # TODO(synk): double-buffer the row gather across batch tiles to overlap the
    # HBM row DMAs of tile b+1 with the reduction of tile b.

    # --- phase 2: logits matmul --------------------------------------------------
    req2 = 2 * (TB2 * Dp * sb + Dp * TV * sb + TV * 4 + TB2 * TV * 4)
    vmem2 = _vmem_limit(req2, cap)
    out_p = pl.pallas_call(
        _logits_kernel,
        out_shape=jax.ShapeDtypeStruct((Bp, Vp), jnp.float32),
        grid=(Bp // TB2, Vp // TV),
        in_specs=[
            pl.BlockSpec((TB2, Dp), lambda b, v: (b, 0)),  # avg tile (reused across vocab tiles)
            pl.BlockSpec((Dp, TV), lambda b, v: (0, v)),   # weight vocab tile, (D, V) layout
            pl.BlockSpec((1, TV), lambda b, v: (0, v)),    # bias vocab tile
        ],
        out_specs=pl.BlockSpec((TB2, TV), lambda b, v: (b, v)),
        compiler_params=pltpu.CompilerParams(
            dimension_semantics=("parallel", "parallel"),  # vocab axis feeds both v7x cores
            vmem_limit_bytes=vmem2,
        ),
    )(avg_p, w_t_p, bias_p)

    return out_p[:B, :V]


if __name__ == "__main__":
    # Small shapes consistent with the module.
    B, C = 8, 4            # batch, context window
    V, D = 64, 32          # vocab_size, embedding_dim

    key = jax.random.PRNGKey(0)
    k_idx, k_emb, k_w, k_b = jax.random.split(key, 4)

    idx = jax.random.randint(k_idx, (B, C), 0, V, dtype=jnp.int32)
    # Deterministic parameter init mirroring PyTorch defaults:
    emb = jax.random.normal(k_emb, (V, D), dtype=jnp.float32)              # nn.Embedding ~ N(0,1)
    bound = 1.0 / (D ** 0.5)
    weight = jax.random.uniform(k_w, (V, D), jnp.float32, -bound, bound)   # nn.Linear default
    bias = jax.random.uniform(k_b, (V,), jnp.float32, -bound, bound)

    # Pure-JAX reference.
    ref = jnp.mean(emb[idx], axis=1) @ weight.T + bias

    # f32 streaming path: tight check of the kernel math.
    out_f32 = jax.block_until_ready(
        cbow_forward(idx, emb, weight, bias, stream_dtype=jnp.float32))
    assert out_f32.shape == (B, V)
    assert jnp.allclose(out_f32, ref, atol=1e-4, rtol=1e-4), "f32 mismatch vs reference"

    # bf16 streaming path (default perf config): input-rounding-limited tolerance.
    out_bf16 = jax.block_until_ready(cbow_forward(idx, emb, weight, bias))
    assert out_bf16.shape == (B, V)
    assert jnp.allclose(out_bf16, ref, atol=3e-2, rtol=3e-2), "bf16 mismatch vs reference"

    print("KERNEL_OK")
</pallas_src>

<mosaic_0001>
module attributes {stable_mosaic.version = 11 : i64} {
  func.func @_avg_embed_kernel(%arg0: i32, %arg1: memref<32xi32, #tpu.memory_space<smem>>, %arg2: memref<64x128xf32, #tpu.memory_space<any>>, %arg3: memref<8x128xf32, #tpu.memory_space<vmem>>, %arg4: memref<32x128xf32, #tpu.memory_space<vmem>>, %arg5: memref<32x!tpu.dma_semaphore, #tpu.memory_space<semaphore_mem>>) attributes {dimension_semantics = [#tpu.dimension_semantics<parallel>], iteration_bounds = array<i64: 1>, scalar_prefetch = 1 : i64, scratch_operands = 2 : i64, tpu.core_type = #tpu.core_type<tc>, window_params = [{}, {transform_indices = @transform_1, window_bounds = array<i64: 8, 128>}]} {
    %c32_i32 = arith.constant 32 : i32
    %0 = arith.muli %arg0, %c32_i32 : i32
    %c0_i32 = arith.constant 0 : i32
    %1 = arith.addi %0, %c0_i32 : i32
    %c0_i32_0 = arith.constant 0 : i32
    %2 = arith.addi %1, %c0_i32_0 : i32
    %3 = arith.index_cast %2 : i32 to index
    %4 = memref.load %arg1[%3] : memref<32xi32, #tpu.memory_space<smem>>
    %c0_i32_1 = arith.constant 0 : i32
    %c0_i32_2 = arith.constant 0 : i32
    %5 = tpu.memref_slice %arg2[%4, %c0_i32_2] : memref<64x128xf32, #tpu.memory_space<any>> -> memref<1x128xf32, #tpu.memory_space<any>>
    %c0_i32_3 = arith.constant 0 : i32
    %c0_i32_4 = arith.constant 0 : i32
    %6 = tpu.memref_slice %arg4[%c0_i32_3, %c0_i32_4] : memref<32x128xf32, #tpu.memory_space<vmem>> -> memref<1x128xf32, #tpu.memory_space<vmem>>
    %7 = tpu.memref_slice %arg5[%c0_i32_1] : memref<32x!tpu.dma_semaphore, #tpu.memory_space<semaphore_mem>> -> memref<1x!tpu.dma_semaphore, #tpu.memory_space<semaphore_mem>>
    %8 = tpu.memref_squeeze %7 : memref<1x!tpu.dma_semaphore, #tpu.memory_space<semaphore_mem>> -> memref<!tpu.dma_semaphore, #tpu.memory_space<semaphore_mem>>
    tpu.enqueue_dma source(%5 : memref<1x128xf32, #tpu.memory_space<any>>) target(%6 : memref<1x128xf32, #tpu.memory_space<vmem>>) target_semaphore(%8 : memref<!tpu.dma_semaphore, #tpu.memory_space<semaphore_mem>>)
    %c4_i32 = arith.constant 4 : i32
    %9 = arith.addi %0, %c4_i32 : i32
    %c0_i32_5 = arith.constant 0 : i32
    %10 = arith.addi %9, %c0_i32_5 : i32
    %11 = arith.index_cast %10 : i32 to index
    %12 = memref.load %arg1[%11] : memref<32xi32, #tpu.memory_space<smem>>
    %c1_i32 = arith.constant 1 : i32
    %c0_i32_6 = arith.constant 0 : i32
    %13 = tpu.memref_slice %arg2[%12, %c0_i32_6] : memref<64x128xf32, #tpu.memory_space<any>> -> memref<1x128xf32, #tpu.memory_space<any>>
    %c1_i32_7 = arith.constant 1 : i32
    %c0_i32_8 = arith.constant 0 : i32
    %14 = tpu.memref_slice %arg4[%c1_i32_7, %c0_i32_8] : memref<32x128xf32, #tpu.memory_space<vmem>> -> memref<1x128xf32, #tpu.memory_space<vmem>>
    %15 = tpu.memref_slice %arg5[%c1_i32] : memref<32x!tpu.dma_semaphore, #tpu.memory_space<semaphore_mem>> -> memref<1x!tpu.dma_semaphore, #tpu.memory_space<semaphore_mem>>
    %16 = tpu.memref_squeeze %15 : memref<1x!tpu.dma_semaphore, #tpu.memory_space<semaphore_mem>> -> memref<!tpu.dma_semaphore, #tpu.memory_space<semaphore_mem>>
    tpu.enqueue_dma source(%13 : memref<1x128xf32, #tpu.memory_space<any>>) target(%14 : memref<1x128xf32, #tpu.memory_space<vmem>>) target_semaphore(%16 : memref<!tpu.dma_semaphore, #tpu.memory_space<semaphore_mem>>)
    %c8_i32 = arith.constant 8 : i32
    %17 = arith.addi %0, %c8_i32 : i32
    %c0_i32_9 = arith.constant 0 : i32
    %18 = arith.addi %17, %c0_i32_9 : i32
    %19 = arith.index_cast %18 : i32 to index
    %20 = memref.load %arg1[%19] : memref<32xi32, #tpu.memory_space<smem>>
    %c2_i32 = arith.constant 2 : i32
    %c0_i32_10 = arith.constant 0 : i32
    %21 = tpu.memref_slice %arg2[%20, %c0_i32_10] : memref<64x128xf32, #tpu.memory_space<any>> -> memref<1x128xf32, #tpu.memory_space<any>>
    %c2_i32_11 = arith.constant 2 : i32
    %c0_i32_12 = arith.constant 0 : i32
    %22 = tpu.memref_slice %arg4[%c2_i32_11, %c0_i32_12] : memref<32x128xf32, #tpu.memory_space<vmem>> -> memref<1x128xf32, #tpu.memory_space<vmem>>
    %23 = tpu.memref_slice %arg5[%c2_i32] : memref<32x!tpu.dma_semaphore, #tpu.memory_space<semaphore_mem>> -> memref<1x!tpu.dma_semaphore, #tpu.memory_space<semaphore_mem>>
    %24 = tpu.memref_squeeze %23 : memref<1x!tpu.dma_semaphore, #tpu.memory_space<semaphore_mem>> -> memref<!tpu.dma_semaphore, #tpu.memory_space<semaphore_mem>>
    tpu.enqueue_dma source(%21 : memref<1x128xf32, #tpu.memory_space<any>>) target(%22 : memref<1x128xf32, #tpu.memory_space<vmem>>) target_semaphore(%24 : memref<!tpu.dma_semaphore, #tpu.memory_space<semaphore_mem>>)
    %c12_i32 = arith.constant 12 : i32
    %25 = arith.addi %0, %c12_i32 : i32
    %c0_i32_13 = arith.constant 0 : i32
    %26 = arith.addi %25, %c0_i32_13 : i32
    %27 = arith.index_cast %26 : i32 to index
    %28 = memref.load %arg1[%27] : memref<32xi32, #tpu.memory_space<smem>>
    %c3_i32 = arith.constant 3 : i32
    %c0_i32_14 = arith.constant 0 : i32
    %29 = tpu.memref_slice %arg2[%28, %c0_i32_14] : memref<64x128xf32, #tpu.memory_space<any>> -> memref<1x128xf32, #tpu.memory_space<any>>
    %c3_i32_15 = arith.constant 3 : i32
    %c0_i32_16 = arith.constant 0 : i32
    %30 = tpu.memref_slice %arg4[%c3_i32_15, %c0_i32_16] : memref<32x128xf32, #tpu.memory_space<vmem>> -> memref<1x128xf32, #tpu.memory_space<vmem>>
    %31 = tpu.memref_slice %arg5[%c3_i32] : memref<32x!tpu.dma_semaphore, #tpu.memory_space<semaphore_mem>> -> memref<1x!tpu.dma_semaphore, #tpu.memory_space<semaphore_mem>>
    %32 = tpu.memref_squeeze %31 : memref<1x!tpu.dma_semaphore, #tpu.memory_space<semaphore_mem>> -> memref<!tpu.dma_semaphore, #tpu.memory_space<semaphore_mem>>
    tpu.enqueue_dma source(%29 : memref<1x128xf32, #tpu.memory_space<any>>) target(%30 : memref<1x128xf32, #tpu.memory_space<vmem>>) target_semaphore(%32 : memref<!tpu.dma_semaphore, #tpu.memory_space<semaphore_mem>>)
    %c16_i32 = arith.constant 16 : i32
    %33 = arith.addi %0, %c16_i32 : i32
    %c0_i32_17 = arith.constant 0 : i32
    %34 = arith.addi %33, %c0_i32_17 : i32
    %35 = arith.index_cast %34 : i32 to index
    %36 = memref.load %arg1[%35] : memref<32xi32, #tpu.memory_space<smem>>
    %c4_i32_18 = arith.constant 4 : i32
    %c0_i32_19 = arith.constant 0 : i32
    %37 = tpu.memref_slice %arg2[%36, %c0_i32_19] : memref<64x128xf32, #tpu.memory_space<any>> -> memref<1x128xf32, #tpu.memory_space<any>>
    %c4_i32_20 = arith.constant 4 : i32
    %c0_i32_21 = arith.constant 0 : i32
    %38 = tpu.memref_slice %arg4[%c4_i32_20, %c0_i32_21] : memref<32x128xf32, #tpu.memory_space<vmem>> -> memref<1x128xf32, #tpu.memory_space<vmem>>
    %39 = tpu.memref_slice %arg5[%c4_i32_18] : memref<32x!tpu.dma_semaphore, #tpu.memory_space<semaphore_mem>> -> memref<1x!tpu.dma_semaphore, #tpu.memory_space<semaphore_mem>>
    %40 = tpu.memref_squeeze %39 : memref<1x!tpu.dma_semaphore, #tpu.memory_space<semaphore_mem>> -> memref<!tpu.dma_semaphore, #tpu.memory_space<semaphore_mem>>
    tpu.enqueue_dma source(%37 : memref<1x128xf32, #tpu.memory_space<any>>) target(%38 : memref<1x128xf32, #tpu.memory_space<vmem>>) target_semaphore(%40 : memref<!tpu.dma_semaphore, #tpu.memory_space<semaphore_mem>>)
    %c20_i32 = arith.constant 20 : i32
    %41 = arith.addi %0, %c20_i32 : i32
    %c0_i32_22 = arith.constant 0 : i32
    %42 = arith.addi %41, %c0_i32_22 : i32
    %43 = arith.index_cast %42 : i32 to index
    %44 = memref.load %arg1[%43] : memref<32xi32, #tpu.memory_space<smem>>
    %c5_i32 = arith.constant 5 : i32
    %c0_i32_23 = arith.constant 0 : i32
    %45 = tpu.memref_slice %arg2[%44, %c0_i32_23] : memref<64x128xf32, #tpu.memory_space<any>> -> memref<1x128xf32, #tpu.memory_space<any>>
    %c5_i32_24 = arith.constant 5 : i32
    %c0_i32_25 = arith.constant 0 : i32
    %46 = tpu.memref_slice %arg4[%c5_i32_24, %c0_i32_25] : memref<32x128xf32, #tpu.memory_space<vmem>> -> memref<1x128xf32, #tpu.memory_space<vmem>>
    %47 = tpu.memref_slice %arg5[%c5_i32] : memref<32x!tpu.dma_semaphore, #tpu.memory_space<semaphore_mem>> -> memref<1x!tpu.dma_semaphore, #tpu.memory_space<semaphore_mem>>
    %48 = tpu.memref_squeeze %47 : memref<1x!tpu.dma_semaphore, #tpu.memory_space<semaphore_mem>> -> memref<!tpu.dma_semaphore, #tpu.memory_space<semaphore_mem>>
    tpu.enqueue_dma source(%45 : memref<1x128xf32, #tpu.memory_space<any>>) target(%46 : memref<1x128xf32, #tpu.memory_space<vmem>>) target_semaphore(%48 : memref<!tpu.dma_semaphore, #tpu.memory_space<semaphore_mem>>)
    %c24_i32 = arith.constant 24 : i32
    %49 = arith.addi %0, %c24_i32 : i32
    %c0_i32_26 = arith.constant 0 : i32
    %50 = arith.addi %49, %c0_i32_26 : i32
    %51 = arith.index_cast %50 : i32 to index
    %52 = memref.load %arg1[%51] : memref<32xi32, #tpu.memory_space<smem>>
    %c6_i32 = arith.constant 6 : i32
    %c0_i32_27 = arith.constant 0 : i32
    %53 = tpu.memref_slice %arg2[%52, %c0_i32_27] : memref<64x128xf32, #tpu.memory_space<any>> -> memref<1x128xf32, #tpu.memory_space<any>>
    %c6_i32_28 = arith.constant 6 : i32
    %c0_i32_29 = arith.constant 0 : i32
    %54 = tpu.memref_slice %arg4[%c6_i32_28, %c0_i32_29] : memref<32x128xf32, #tpu.memory_space<vmem>> -> memref<1x128xf32, #tpu.memory_space<vmem>>
    %55 = tpu.memref_slice %arg5[%c6_i32] : memref<32x!tpu.dma_semaphore, #tpu.memory_space<semaphore_mem>> -> memref<1x!tpu.dma_semaphore, #tpu.memory_space<semaphore_mem>>
    %56 = tpu.memref_squeeze %55 : memref<1x!tpu.dma_semaphore, #tpu.memory_space<semaphore_mem>> -> memref<!tpu.dma_semaphore, #tpu.memory_space<semaphore_mem>>
    tpu.enqueue_dma source(%53 : memref<1x128xf32, #tpu.memory_space<any>>) target(%54 : memref<1x128xf32, #tpu.memory_space<vmem>>) target_semaphore(%56 : memref<!tpu.dma_semaphore, #tpu.memory_space<semaphore_mem>>)
    %c28_i32 = arith.constant 28 : i32
    %57 = arith.addi %0, %c28_i32 : i32
    %c0_i32_30 = arith.constant 0 : i32
    %58 = arith.addi %57, %c0_i32_30 : i32
    %59 = arith.index_cast %58 : i32 to index
    %60 = memref.load %arg1[%59] : memref<32xi32, #tpu.memory_space<smem>>
    %c7_i32 = arith.constant 7 : i32
    %c0_i32_31 = arith.constant 0 : i32
    %61 = tpu.memref_slice %arg2[%60, %c0_i32_31] : memref<64x128xf32, #tpu.memory_space<any>> -> memref<1x128xf32, #tpu.memory_space<any>>
    %c7_i32_32 = arith.constant 7 : i32
    %c0_i32_33 = arith.constant 0 : i32
    %62 = tpu.memref_slice %arg4[%c7_i32_32, %c0_i32_33] : memref<32x128xf32, #tpu.memory_space<vmem>> -> memref<1x128xf32, #tpu.memory_space<vmem>>
    %63 = tpu.memref_slice %arg5[%c7_i32] : memref<32x!tpu.dma_semaphore, #tpu.memory_space<semaphore_mem>> -> memref<1x!tpu.dma_semaphore, #tpu.memory_space<semaphore_mem>>
    %64 = tpu.memref_squeeze %63 : memref<1x!tpu.dma_semaphore, #tpu.memory_space<semaphore_mem>> -> memref<!tpu.dma_semaphore, #tpu.memory_space<semaphore_mem>>
    tpu.enqueue_dma source(%61 : memref<1x128xf32, #tpu.memory_space<any>>) target(%62 : memref<1x128xf32, #tpu.memory_space<vmem>>) target_semaphore(%64 : memref<!tpu.dma_semaphore, #tpu.memory_space<semaphore_mem>>)
    %c0_i32_34 = arith.constant 0 : i32
    %65 = arith.addi %0, %c0_i32_34 : i32
    %c1_i32_35 = arith.constant 1 : i32
    %66 = arith.addi %65, %c1_i32_35 : i32
    %67 = arith.index_cast %66 : i32 to index
    %68 = memref.load %arg1[%67] : memref<32xi32, #tpu.memory_space<smem>>
    %c8_i32_36 = arith.constant 8 : i32
    %c0_i32_37 = arith.constant 0 : i32
    %69 = tpu.memref_slice %arg2[%68, %c0_i32_37] : memref<64x128xf32, #tpu.memory_space<any>> -> memref<1x128xf32, #tpu.memory_space<any>>
    %c8_i32_38 = arith.constant 8 : i32
    %c0_i32_39 = arith.constant 0 : i32
    %70 = tpu.memref_slice %arg4[%c8_i32_38, %c0_i32_39] : memref<32x128xf32, #tpu.memory_space<vmem>> -> memref<1x128xf32, #tpu.memory_space<vmem>>
    %71 = tpu.memref_slice %arg5[%c8_i32_36] : memref<32x!tpu.dma_semaphore, #tpu.memory_space<semaphore_mem>> -> memref<1x!tpu.dma_semaphore, #tpu.memory_space<semaphore_mem>>
    %72 = tpu.memref_squeeze %71 : memref<1x!tpu.dma_semaphore, #tpu.memory_space<semaphore_mem>> -> memref<!tpu.dma_semaphore, #tpu.memory_space<semaphore_mem>>
    tpu.enqueue_dma source(%69 : memref<1x128xf32, #tpu.memory_space<any>>) target(%70 : memref<1x128xf32, #tpu.memory_space<vmem>>) target_semaphore(%72 : memref<!tpu.dma_semaphore, #tpu.memory_space<semaphore_mem>>)
    %c4_i32_40 = arith.constant 4 : i32
    %73 = arith.addi %0, %c4_i32_40 : i32
    %c1_i32_41 = arith.constant 1 : i32
    %74 = arith.addi %73, %c1_i32_41 : i32
    %75 = arith.index_cast %74 : i32 to index
    %76 = memref.load %arg1[%75] : memref<32xi32, #tpu.memory_space<smem>>
    %c9_i32 = arith.constant 9 : i32
    %c0_i32_42 = arith.constant 0 : i32
    %77 = tpu.memref_slice %arg2[%76, %c0_i32_42] : memref<64x128xf32, #tpu.memory_space<any>> -> memref<1x128xf32, #tpu.memory_space<any>>
    %c9_i32_43 = arith.constant 9 : i32
    %c0_i32_44 = arith.constant 0 : i32
    %78 = tpu.memref_slice %arg4[%c9_i32_43, %c0_i32_44] : memref<32x128xf32, #tpu.memory_space<vmem>> -> memref<1x128xf32, #tpu.memory_space<vmem>>
    %79 = tpu.memref_slice %arg5[%c9_i32] : memref<32x!tpu.dma_semaphore, #tpu.memory_space<semaphore_mem>> -> memref<1x!tpu.dma_semaphore, #tpu.memory_space<semaphore_mem>>
    %80 = tpu.memref_squeeze %79 : memref<1x!tpu.dma_semaphore, #tpu.memory_space<semaphore_mem>> -> memref<!tpu.dma_semaphore, #tpu.memory_space<semaphore_mem>>
    tpu.enqueue_dma source(%77 : memref<1x128xf32, #tpu.memory_space<any>>) target(%78 : memref<1x128xf32, #tpu.memory_space<vmem>>) target_semaphore(%80 : memref<!tpu.dma_semaphore, #tpu.memory_space<semaphore_mem>>)
    %c8_i32_45 = arith.constant 8 : i32
    %81 = arith.addi %0, %c8_i32_45 : i32
    %c1_i32_46 = arith.constant 1 : i32
    %82 = arith.addi %81, %c1_i32_46 : i32
    %83 = arith.index_cast %82 : i32 to index
    %84 = memref.load %arg1[%83] : memref<32xi32, #tpu.memory_space<smem>>
    %c10_i32 = arith.constant 10 : i32
    %c0_i32_47 = arith.constant 0 : i32
    %85 = tpu.memref_slice %arg2[%84, %c0_i32_47] : memref<64x128xf32, #tpu.memory_space<any>> -> memref<1x128xf32, #tpu.memory_space<any>>
    %c10_i32_48 = arith.constant 10 : i32
    %c0_i32_49 = arith.constant 0 : i32
    %86 = tpu.memref_slice %arg4[%c10_i32_48, %c0_i32_49] : memref<32x128xf32, #tpu.memory_space<vmem>> -> memref<1x128xf32, #tpu.memory_space<vmem>>
    %87 = tpu.memref_slice %arg5[%c10_i32] : memref<32x!tpu.dma_semaphore, #tpu.memory_space<semaphore_mem>> -> memref<1x!tpu.dma_semaphore, #tpu.memory_space<semaphore_mem>>
    %88 = tpu.memref_squeeze %87 : memref<1x!tpu.dma_semaphore, #tpu.memory_space<semaphore_mem>> -> memref<!tpu.dma_semaphore, #tpu.memory_space<semaphore_mem>>
    tpu.enqueue_dma source(%85 : memref<1x128xf32, #tpu.memory_space<any>>) target(%86 : memref<1x128xf32, #tpu.memory_space<vmem>>) target_semaphore(%88 : memref<!tpu.dma_semaphore, #tpu.memory_space<semaphore_mem>>)
    %c12_i32_50 = arith.constant 12 : i32
    %89 = arith.addi %0, %c12_i32_50 : i32
    %c1_i32_51 = arith.constant 1 : i32
    %90 = arith.addi %89, %c1_i32_51 : i32
    %91 = arith.index_cast %90 : i32 to index
    %92 = memref.load %arg1[%91] : memref<32xi32, #tpu.memory_space<smem>>
    %c11_i32 = arith.constant 11 : i32
    %c0_i32_52 = arith.constant 0 : i32
    %93 = tpu.memref_slice %arg2[%92, %c0_i32_52] : memref<64x128xf32, #tpu.memory_space<any>> -> memref<1x128xf32, #tpu.memory_space<any>>
    %c11_i32_53 = arith.constant 11 : i32
    %c0_i32_54 = arith.constant 0 : i32
    %94 = tpu.memref_slice %arg4[%c11_i32_53, %c0_i32_54] : memref<32x128xf32, #tpu.memory_space<vmem>> -> memref<1x128xf32, #tpu.memory_space<vmem>>
    %95 = tpu.memref_slice %arg5[%c11_i32] : memref<32x!tpu.dma_semaphore, #tpu.memory_space<semaphore_mem>> -> memref<1x!tpu.dma_semaphore, #tpu.memory_space<semaphore_mem>>
    %96 = tpu.memref_squeeze %95 : memref<1x!tpu.dma_semaphore, #tpu.memory_space<semaphore_mem>> -> memref<!tpu.dma_semaphore, #tpu.memory_space<semaphore_mem>>
    tpu.enqueue_dma source(%93 : memref<1x128xf32, #tpu.memory_space<any>>) target(%94 : memref<1x128xf32, #tpu.memory_space<vmem>>) target_semaphore(%96 : memref<!tpu.dma_semaphore, #tpu.memory_space<semaphore_mem>>)
    %c16_i32_55 = arith.constant 16 : i32
    %97 = arith.addi %0, %c16_i32_55 : i32
    %c1_i32_56 = arith.constant 1 : i32
    %98 = arith.addi %97, %c1_i32_56 : i32
    %99 = arith.index_cast %98 : i32 to index
    %100 = memref.load %arg1[%99] : memref<32xi32, #tpu.memory_space<smem>>
    %c12_i32_57 = arith.constant 12 : i32
    %c0_i32_58 = arith.constant 0 : i32
    %101 = tpu.memref_slice %arg2[%100, %c0_i32_58] : memref<64x128xf32, #tpu.memory_space<any>> -> memref<1x128xf32, #tpu.memory_space<any>>
    %c12_i32_59 = arith.constant 12 : i32
    %c0_i32_60 = arith.constant 0 : i32
    %102 = tpu.memref_slice %arg4[%c12_i32_59, %c0_i32_60] : memref<32x128xf32, #tpu.memory_space<vmem>> -> memref<1x128xf32, #tpu.memory_space<vmem>>
    %103 = tpu.memref_slice %arg5[%c12_i32_57] : memref<32x!tpu.dma_semaphore, #tpu.memory_space<semaphore_mem>> -> memref<1x!tpu.dma_semaphore, #tpu.memory_space<semaphore_mem>>
    %104 = tpu.memref_squeeze %103 : memref<1x!tpu.dma_semaphore, #tpu.memory_space<semaphore_mem>> -> memref<!tpu.dma_semaphore, #tpu.memory_space<semaphore_mem>>
    tpu.enqueue_dma source(%101 : memref<1x128xf32, #tpu.memory_space<any>>) target(%102 : memref<1x128xf32, #tpu.memory_space<vmem>>) target_semaphore(%104 : memref<!tpu.dma_semaphore, #tpu.memory_space<semaphore_mem>>)
    %c20_i32_61 = arith.constant 20 : i32
    %105 = arith.addi %0, %c20_i32_61 : i32
    %c1_i32_62 = arith.constant 1 : i32
    %106 = arith.addi %105, %c1_i32_62 : i32
    %107 = arith.index_cast %106 : i32 to index
    %108 = memref.load %arg1[%107] : memref<32xi32, #tpu.memory_space<smem>>
    %c13_i32 = arith.constant 13 : i32
    %c0_i32_63 = arith.constant 0 : i32
    %109 = tpu.memref_slice %arg2[%108, %c0_i32_63] : memref<64x128xf32, #tpu.memory_space<any>> -> memref<1x128xf32, #tpu.memory_space<any>>
    %c13_i32_64 = arith.constant 13 : i32
    %c0_i32_65 = arith.constant 0 : i32
    %110 = tpu.memref_slice %arg4[%c13_i32_64, %c0_i32_65] : memref<32x128xf32, #tpu.memory_space<vmem>> -> memref<1x128xf32, #tpu.memory_space<vmem>>
    %111 = tpu.memref_slice %arg5[%c13_i32] : memref<32x!tpu.dma_semaphore, #tpu.memory_space<semaphore_mem>> -> memref<1x!tpu.dma_semaphore, #tpu.memory_space<semaphore_mem>>
    %112 = tpu.memref_squeeze %111 : memref<1x!tpu.dma_semaphore, #tpu.memory_space<semaphore_mem>> -> memref<!tpu.dma_semaphore, #tpu.memory_space<semaphore_mem>>
    tpu.enqueue_dma source(%109 : memref<1x128xf32, #tpu.memory_space<any>>) target(%110 : memref<1x128xf32, #tpu.memory_space<vmem>>) target_semaphore(%112 : memref<!tpu.dma_semaphore, #tpu.memory_space<semaphore_mem>>)
    %c24_i32_66 = arith.constant 24 : i32
    %113 = arith.addi %0, %c24_i32_66 : i32
    %c1_i32_67 = arith.constant 1 : i32
    %114 = arith.addi %113, %c1_i32_67 : i32
    %115 = arith.index_cast %114 : i32 to index
    %116 = memref.load %arg1[%115] : memref<32xi32, #tpu.memory_space<smem>>
    %c14_i32 = arith.constant 14 : i32
    %c0_i32_68 = arith.constant 0 : i32
    %117 = tpu.memref_slice %arg2[%116, %c0_i32_68] : memref<64x128xf32, #tpu.memory_space<any>> -> memref<1x128xf32, #tpu.memory_space<any>>
    %c14_i32_69 = arith.constant 14 : i32
    %c0_i32_70 = arith.constant 0 : i32
    %118 = tpu.memref_slice %arg4[%c14_i32_69, %c0_i32_70] : memref<32x128xf32, #tpu.memory_space<vmem>> -> memref<1x128xf32, #tpu.memory_space<vmem>>
    %119 = tpu.memref_slice %arg5[%c14_i32] : memref<32x!tpu.dma_semaphore, #tpu.memory_space<semaphore_mem>> -> memref<1x!tpu.dma_semaphore, #tpu.memory_space<semaphore_mem>>
    %120 = tpu.memref_squeeze %119 : memref<1x!tpu.dma_semaphore, #tpu.memory_space<semaphore_mem>> -> memref<!tpu.dma_semaphore, #tpu.memory_space<semaphore_mem>>
    tpu.enqueue_dma source(%117 : memref<1x128xf32, #tpu.memory_space<any>>) target(%118 : memref<1x128xf32, #tpu.memory_space<vmem>>) target_semaphore(%120 : memref<!tpu.dma_semaphore, #tpu.memory_space<semaphore_mem>>)
    %c28_i32_71 = arith.constant 28 : i32
    %121 = arith.addi %0, %c28_i32_71 : i32
    %c1_i32_72 = arith.constant 1 : i32
    %122 = arith.addi %121, %c1_i32_72 : i32
    %123 = arith.index_cast %122 : i32 to index
    %124 = memref.load %arg1[%123] : memref<32xi32, #tpu.memory_space<smem>>
    %c15_i32 = arith.constant 15 : i32
    %c0_i32_73 = arith.constant 0 : i32
    %125 = tpu.memref_slice %arg2[%124, %c0_i32_73] : memref<64x128xf32, #tpu.memory_space<any>> -> memref<1x128xf32, #tpu.memory_space<any>>
    %c15_i32_74 = arith.constant 15 : i32
    %c0_i32_75 = arith.constant 0 : i32
    %126 = tpu.memref_slice %arg4[%c15_i32_74, %c0_i32_75] : memref<32x128xf32, #tpu.memory_space<vmem>> -> memref<1x128xf32, #tpu.memory_space<vmem>>
    %127 = tpu.memref_slice %arg5[%c15_i32] : memref<32x!tpu.dma_semaphore, #tpu.memory_space<semaphore_mem>> -> memref<1x!tpu.dma_semaphore, #tpu.memory_space<semaphore_mem>>
    %128 = tpu.memref_squeeze %127 : memref<1x!tpu.dma_semaphore, #tpu.memory_space<semaphore_mem>> -> memref<!tpu.dma_semaphore, #tpu.memory_space<semaphore_mem>>
    tpu.enqueue_dma source(%125 : memref<1x128xf32, #tpu.memory_space<any>>) target(%126 : memref<1x128xf32, #tpu.memory_space<vmem>>) target_semaphore(%128 : memref<!tpu.dma_semaphore, #tpu.memory_space<semaphore_mem>>)
    %c0_i32_76 = arith.constant 0 : i32
    %129 = arith.addi %0, %c0_i32_76 : i32
    %c2_i32_77 = arith.constant 2 : i32
    %130 = arith.addi %129, %c2_i32_77 : i32
    %131 = arith.index_cast %130 : i32 to index
    %132 = memref.load %arg1[%131] : memref<32xi32, #tpu.memory_space<smem>>
    %c16_i32_78 = arith.constant 16 : i32
    %c0_i32_79 = arith.constant 0 : i32
    %133 = tpu.memref_slice %arg2[%132, %c0_i32_79] : memref<64x128xf32, #tpu.memory_space<any>> -> memref<1x128xf32, #tpu.memory_space<any>>
    %c16_i32_80 = arith.constant 16 : i32
    %c0_i32_81 = arith.constant 0 : i32
    %134 = tpu.memref_slice %arg4[%c16_i32_80, %c0_i32_81] : memref<32x128xf32, #tpu.memory_space<vmem>> -> memref<1x128xf32, #tpu.memory_space<vmem>>
    %135 = tpu.memref_slice %arg5[%c16_i32_78] : memref<32x!tpu.dma_semaphore, #tpu.memory_space<semaphore_mem>> -> memref<1x!tpu.dma_semaphore, #tpu.memory_space<semaphore_mem>>
    %136 = tpu.memref_squeeze %135 : memref<1x!tpu.dma_semaphore, #tpu.memory_space<semaphore_mem>> -> memref<!tpu.dma_semaphore, #tpu.memory_space<semaphore_mem>>
    tpu.enqueue_dma source(%133 : memref<1x128xf32, #tpu.memory_space<any>>) target(%134 : memref<1x128xf32, #tpu.memory_space<vmem>>) target_semaphore(%136 : memref<!tpu.dma_semaphore, #tpu.memory_space<semaphore_mem>>)
    %c4_i32_82 = arith.constant 4 : i32
    %137 = arith.addi %0, %c4_i32_82 : i32
    %c2_i32_83 = arith.constant 2 : i32
    %138 = arith.addi %137, %c2_i32_83 : i32
    %139 = arith.index_cast %138 : i32 to index
    %140 = memref.load %arg1[%139] : memref<32xi32, #tpu.memory_space<smem>>
    %c17_i32 = arith.constant 17 : i32
    %c0_i32_84 = arith.constant 0 : i32
    %141 = tpu.memref_slice %arg2[%140, %c0_i32_84] : memref<64x128xf32, #tpu.memory_space<any>> -> memref<1x128xf32, #tpu.memory_space<any>>
    %c17_i32_85 = arith.constant 17 : i32
    %c0_i32_86 = arith.constant 0 : i32
    %142 = tpu.memref_slice %arg4[%c17_i32_85, %c0_i32_86] : memref<32x128xf32, #tpu.memory_space<vmem>> -> memref<1x128xf32, #tpu.memory_space<vmem>>
    %143 = tpu.memref_slice %arg5[%c17_i32] : memref<32x!tpu.dma_semaphore, #tpu.memory_space<semaphore_mem>> -> memref<1x!tpu.dma_semaphore, #tpu.memory_space<semaphore_mem>>
    %144 = tpu.memref_squeeze %143 : memref<1x!tpu.dma_semaphore, #tpu.memory_space<semaphore_mem>> -> memref<!tpu.dma_semaphore, #tpu.memory_space<semaphore_mem>>
    tpu.enqueue_dma source(%141 : memref<1x128xf32, #tpu.memory_space<any>>) target(%142 : memref<1x128xf32, #tpu.memory_space<vmem>>) target_semaphore(%144 : memref<!tpu.dma_semaphore, #tpu.memory_space<semaphore_mem>>)
    %c8_i32_87 = arith.constant 8 : i32
    %145 = arith.addi %0, %c8_i32_87 : i32
    %c2_i32_88 = arith.constant 2 : i32
    %146 = arith.addi %145, %c2_i32_88 : i32
    %147 = arith.index_cast %146 : i32 to index
    %148 = memref.load %arg1[%147] : memref<32xi32, #tpu.memory_space<smem>>
    %c18_i32 = arith.constant 18 : i32
    %c0_i32_89 = arith.constant 0 : i32
    %149 = tpu.memref_slice %arg2[%148, %c0_i32_89] : memref<64x128xf32, #tpu.memory_space<any>> -> memref<1x128xf32, #tpu.memory_space<any>>
    %c18_i32_90 = arith.constant 18 : i32
    %c0_i32_91 = arith.constant 0 : i32
    %150 = tpu.memref_slice %arg4[%c18_i32_90, %c0_i32_91] : memref<32x128xf32, #tpu.memory_space<vmem>> -> memref<1x128xf32, #tpu.memory_space<vmem>>
    %151 = tpu.memref_slice %arg5[%c18_i32] : memref<32x!tpu.dma_semaphore, #tpu.memory_space<semaphore_mem>> -> memref<1x!tpu.dma_semaphore, #tpu.memory_space<semaphore_mem>>
    %152 = tpu.memref_squeeze %151 : memref<1x!tpu.dma_semaphore, #tpu.memory_space<semaphore_mem>> -> memref<!tpu.dma_semaphore, #tpu.memory_space<semaphore_mem>>
    tpu.enqueue_dma source(%149 : memref<1x128xf32, #tpu.memory_space<any>>) target(%150 : memref<1x128xf32, #tpu.memory_space<vmem>>) target_semaphore(%152 : memref<!tpu.dma_semaphore, #tpu.memory_space<semaphore_mem>>)
    %c12_i32_92 = arith.constant 12 : i32
    %153 = arith.addi %0, %c12_i32_92 : i32
    %c2_i32_93 = arith.constant 2 : i32
    %154 = arith.addi %153, %c2_i32_93 : i32
    %155 = arith.index_cast %154 : i32 to index
    %156 = memref.load %arg1[%155] : memref<32xi32, #tpu.memory_space<smem>>
    %c19_i32 = arith.constant 19 : i32
    %c0_i32_94 = arith.constant 0 : i32
    %157 = tpu.memref_slice %arg2[%156, %c0_i32_94] : memref<64x128xf32, #tpu.memory_space<any>> -> memref<1x128xf32, #tpu.memory_space<any>>
    %c19_i32_95 = arith.constant 19 : i32
    %c0_i32_96 = arith.constant 0 : i32
    %158 = tpu.memref_slice %arg4[%c19_i32_95, %c0_i32_96] : memref<32x128xf32, #tpu.memory_space<vmem>> -> memref<1x128xf32, #tpu.memory_space<vmem>>
    %159 = tpu.memref_slice %arg5[%c19_i32] : memref<32x!tpu.dma_semaphore, #tpu.memory_space<semaphore_mem>> -> memref<1x!tpu.dma_semaphore, #tpu.memory_space<semaphore_mem>>
    %160 = tpu.memref_squeeze %159 : memref<1x!tpu.dma_semaphore, #tpu.memory_space<semaphore_mem>> -> memref<!tpu.dma_semaphore, #tpu.memory_space<semaphore_mem>>
    tpu.enqueue_dma source(%157 : memref<1x128xf32, #tpu.memory_space<any>>) target(%158 : memref<1x128xf32, #tpu.memory_space<vmem>>) target_semaphore(%160 : memref<!tpu.dma_semaphore, #tpu.memory_space<semaphore_mem>>)
    %c16_i32_97 = arith.constant 16 : i32
    %161 = arith.addi %0, %c16_i32_97 : i32
    %c2_i32_98 = arith.constant 2 : i32
    %162 = arith.addi %161, %c2_i32_98 : i32
    %163 = arith.index_cast %162 : i32 to index
    %164 = memref.load %arg1[%163] : memref<32xi32, #tpu.memory_space<smem>>
    %c20_i32_99 = arith.constant 20 : i32
    %c0_i32_100 = arith.constant 0 : i32
    %165 = tpu.memref_slice %arg2[%164, %c0_i32_100] : memref<64x128xf32, #tpu.memory_space<any>> -> memref<1x128xf32, #tpu.memory_space<any>>
    %c20_i32_101 = arith.constant 20 : i32
    %c0_i32_102 = arith.constant 0 : i32
    %166 = tpu.memref_slice %arg4[%c20_i32_101, %c0_i32_102] : memref<32x128xf32, #tpu.memory_space<vmem>> -> memref<1x128xf32, #tpu.memory_space<vmem>>
    %167 = tpu.memref_slice %arg5[%c20_i32_99] : memref<32x!tpu.dma_semaphore, #tpu.memory_space<semaphore_mem>> -> memref<1x!tpu.dma_semaphore, #tpu.memory_space<semaphore_mem>>
    %168 = tpu.memref_squeeze %167 : memref<1x!tpu.dma_semaphore, #tpu.memory_space<semaphore_mem>> -> memref<!tpu.dma_semaphore, #tpu.memory_space<semaphore_mem>>
    tpu.enqueue_dma source(%165 : memref<1x128xf32, #tpu.memory_space<any>>) target(%166 : memref<1x128xf32, #tpu.memory_space<vmem>>) target_semaphore(%168 : memref<!tpu.dma_semaphore, #tpu.memory_space<semaphore_mem>>)
    %c20_i32_103 = arith.constant 20 : i32
    %169 = arith.addi %0, %c20_i32_103 : i32
    %c2_i32_104 = arith.constant 2 : i32
    %170 = arith.addi %169, %c2_i32_104 : i32
    %171 = arith.index_cast %170 : i32 to index
    %172 = memref.load %arg1[%171] : memref<32xi32, #tpu.memory_space<smem>>
    %c21_i32 = arith.constant 21 : i32
    %c0_i32_105 = arith.constant 0 : i32
    %173 = tpu.memref_slice %arg2[%172, %c0_i32_105] : memref<64x128xf32, #tpu.memory_space<any>> -> memref<1x128xf32, #tpu.memory_space<any>>
    %c21_i32_106 = arith.constant 21 : i32
    %c0_i32_107 = arith.constant 0 : i32
    %174 = tpu.memref_slice %arg4[%c21_i32_106, %c0_i32_107] : memref<32x128xf32, #tpu.memory_space<vmem>> -> memref<1x128xf32, #tpu.memory_space<vmem>>
    %175 = tpu.memref_slice %arg5[%c21_i32] : memref<32x!tpu.dma_semaphore, #tpu.memory_space<semaphore_mem>> -> memref<1x!tpu.dma_semaphore, #tpu.memory_space<semaphore_mem>>
    %176 = tpu.memref_squeeze %175 : memref<1x!tpu.dma_semaphore, #tpu.memory_space<semaphore_mem>> -> memref<!tpu.dma_semaphore, #tpu.memory_space<semaphore_mem>>
    tpu.enqueue_dma source(%173 : memref<1x128xf32, #tpu.memory_space<any>>) target(%174 : memref<1x128xf32, #tpu.memory_space<vmem>>) target_semaphore(%176 : memref<!tpu.dma_semaphore, #tpu.memory_space<semaphore_mem>>)
    %c24_i32_108 = arith.constant 24 : i32
    %177 = arith.addi %0, %c24_i32_108 : i32
    %c2_i32_109 = arith.constant 2 : i32
    %178 = arith.addi %177, %c2_i32_109 : i32
    %179 = arith.index_cast %178 : i32 to index
    %180 = memref.load %arg1[%179] : memref<32xi32, #tpu.memory_space<smem>>
    %c22_i32 = arith.constant 22 : i32
    %c0_i32_110 = arith.constant 0 : i32
    %181 = tpu.memref_slice %arg2[%180, %c0_i32_110] : memref<64x128xf32, #tpu.memory_space<any>> -> memref<1x128xf32, #tpu.memory_space<any>>
    %c22_i32_111 = arith.constant 22 : i32
    %c0_i32_112 = arith.constant 0 : i32
    %182 = tpu.memref_slice %arg4[%c22_i32_111, %c0_i32_112] : memref<32x128xf32, #tpu.memory_space<vmem>> -> memref<1x128xf32, #tpu.memory_space<vmem>>
    %183 = tpu.memref_slice %arg5[%c22_i32] : memref<32x!tpu.dma_semaphore, #tpu.memory_space<semaphore_mem>> -> memref<1x!tpu.dma_semaphore, #tpu.memory_space<semaphore_mem>>
    %184 = tpu.memref_squeeze %183 : memref<1x!tpu.dma_semaphore, #tpu.memory_space<semaphore_mem>> -> memref<!tpu.dma_semaphore, #tpu.memory_space<semaphore_mem>>
    tpu.enqueue_dma source(%181 : memref<1x128xf32, #tpu.memory_space<any>>) target(%182 : memref<1x128xf32, #tpu.memory_space<vmem>>) target_semaphore(%184 : memref<!tpu.dma_semaphore, #tpu.memory_space<semaphore_mem>>)
    %c28_i32_113 = arith.constant 28 : i32
    %185 = arith.addi %0, %c28_i32_113 : i32
    %c2_i32_114 = arith.constant 2 : i32
    %186 = arith.addi %185, %c2_i32_114 : i32
    %187 = arith.index_cast %186 : i32 to index
    %188 = memref.load %arg1[%187] : memref<32xi32, #tpu.memory_space<smem>>
    %c23_i32 = arith.constant 23 : i32
    %c0_i32_115 = arith.constant 0 : i32
    %189 = tpu.memref_slice %arg2[%188, %c0_i32_115] : memref<64x128xf32, #tpu.memory_space<any>> -> memref<1x128xf32, #tpu.memory_space<any>>
    %c23_i32_116 = arith.constant 23 : i32
    %c0_i32_117 = arith.constant 0 : i32
    %190 = tpu.memref_slice %arg4[%c23_i32_116, %c0_i32_117] : memref<32x128xf32, #tpu.memory_space<vmem>> -> memref<1x128xf32, #tpu.memory_space<vmem>>
    %191 = tpu.memref_slice %arg5[%c23_i32] : memref<32x!tpu.dma_semaphore, #tpu.memory_space<semaphore_mem>> -> memref<1x!tpu.dma_semaphore, #tpu.memory_space<semaphore_mem>>
    %192 = tpu.memref_squeeze %191 : memref<1x!tpu.dma_semaphore, #tpu.memory_space<semaphore_mem>> -> memref<!tpu.dma_semaphore, #tpu.memory_space<semaphore_mem>>
    tpu.enqueue_dma source(%189 : memref<1x128xf32, #tpu.memory_space<any>>) target(%190 : memref<1x128xf32, #tpu.memory_space<vmem>>) target_semaphore(%192 : memref<!tpu.dma_semaphore, #tpu.memory_space<semaphore_mem>>)
    %c0_i32_118 = arith.constant 0 : i32
    %193 = arith.addi %0, %c0_i32_118 : i32
    %c3_i32_119 = arith.constant 3 : i32
    %194 = arith.addi %193, %c3_i32_119 : i32
    %195 = arith.index_cast %194 : i32 to index
    %196 = memref.load %arg1[%195] : memref<32xi32, #tpu.memory_space<smem>>
    %c24_i32_120 = arith.constant 24 : i32
    %c0_i32_121 = arith.constant 0 : i32
    %197 = tpu.memref_slice %arg2[%196, %c0_i32_121] : memref<64x128xf32, #tpu.memory_space<any>> -> memref<1x128xf32, #tpu.memory_space<any>>
    %c24_i32_122 = arith.constant 24 : i32
    %c0_i32_123 = arith.constant 0 : i32
    %198 = tpu.memref_slice %arg4[%c24_i32_122, %c0_i32_123] : memref<32x128xf32, #tpu.memory_space<vmem>> -> memref<1x128xf32, #tpu.memory_space<vmem>>
    %199 = tpu.memref_slice %arg5[%c24_i32_120] : memref<32x!tpu.dma_semaphore, #tpu.memory_space<semaphore_mem>> -> memref<1x!tpu.dma_semaphore, #tpu.memory_space<semaphore_mem>>
    %200 = tpu.memref_squeeze %199 : memref<1x!tpu.dma_semaphore, #tpu.memory_space<semaphore_mem>> -> memref<!tpu.dma_semaphore, #tpu.memory_space<semaphore_mem>>
    tpu.enqueue_dma source(%197 : memref<1x128xf32, #tpu.memory_space<any>>) target(%198 : memref<1x128xf32, #tpu.memory_space<vmem>>) target_semaphore(%200 : memref<!tpu.dma_semaphore, #tpu.memory_space<semaphore_mem>>)
    %c4_i32_124 = arith.constant 4 : i32
    %201 = arith.addi %0, %c4_i32_124 : i32
    %c3_i32_125 = arith.constant 3 : i32
    %202 = arith.addi %201, %c3_i32_125 : i32
    %203 = arith.index_cast %202 : i32 to index
    %204 = memref.load %arg1[%203] : memref<32xi32, #tpu.memory_space<smem>>
    %c25_i32 = arith.constant 25 : i32
    %c0_i32_126 = arith.constant 0 : i32
    %205 = tpu.memref_slice %arg2[%204, %c0_i32_126] : memref<64x128xf32, #tpu.memory_space<any>> -> memref<1x128xf32, #tpu.memory_space<any>>
    %c25_i32_127 = arith.constant 25 : i32
    %c0_i32_128 = arith.constant 0 : i32
    %206 = tpu.memref_slice %arg4[%c25_i32_127, %c0_i32_128] : memref<32x128xf32, #tpu.memory_space<vmem>> -> memref<1x128xf32, #tpu.memory_space<vmem>>
    %207 = tpu.memref_slice %arg5[%c25_i32] : memref<32x!tpu.dma_semaphore, #tpu.memory_space<semaphore_mem>> -> memref<1x!tpu.dma_semaphore, #tpu.memory_space<semaphore_mem>>
    %208 = tpu.memref_squeeze %207 : memref<1x!tpu.dma_semaphore, #tpu.memory_space<semaphore_mem>> -> memref<!tpu.dma_semaphore, #tpu.memory_space<semaphore_mem>>
    tpu.enqueue_dma source(%205 : memref<1x128xf32, #tpu.memory_space<any>>) target(%206 : memref<1x128xf32, #tpu.memory_space<vmem>>) target_semaphore(%208 : memref<!tpu.dma_semaphore, #tpu.memory_space<semaphore_mem>>)
    %c8_i32_129 = arith.constant 8 : i32
    %209 = arith.addi %0, %c8_i32_129 : i32
    %c3_i32_130 = arith.constant 3 : i32
    %210 = arith.addi %209, %c3_i32_130 : i32
    %211 = arith.index_cast %210 : i32 to index
    %212 = memref.load %arg1[%211] : memref<32xi32, #tpu.memory_space<smem>>
    %c26_i32 = arith.constant 26 : i32
    %c0_i32_131 = arith.constant 0 : i32
    %213 = tpu.memref_slice %arg2[%212, %c0_i32_131] : memref<64x128xf32, #tpu.memory_space<any>> -> memref<1x128xf32, #tpu.memory_space<any>>
    %c26_i32_132 = arith.constant 26 : i32
    %c0_i32_133 = arith.constant 0 : i32
    %214 = tpu.memref_slice %arg4[%c26_i32_132, %c0_i32_133] : memref<32x128xf32, #tpu.memory_space<vmem>> -> memref<1x128xf32, #tpu.memory_space<vmem>>
    %215 = tpu.memref_slice %arg5[%c26_i32] : memref<32x!tpu.dma_semaphore, #tpu.memory_space<semaphore_mem>> -> memref<1x!tpu.dma_semaphore, #tpu.memory_space<semaphore_mem>>
    %216 = tpu.memref_squeeze %215 : memref<1x!tpu.dma_semaphore, #tpu.memory_space<semaphore_mem>> -> memref<!tpu.dma_semaphore, #tpu.memory_space<semaphore_mem>>
    tpu.enqueue_dma source(%213 : memref<1x128xf32, #tpu.memory_space<any>>) target(%214 : memref<1x128xf32, #tpu.memory_space<vmem>>) target_semaphore(%216 : memref<!tpu.dma_semaphore, #tpu.memory_space<semaphore_mem>>)
    %c12_i32_134 = arith.constant 12 : i32
    %217 = arith.addi %0, %c12_i32_134 : i32
    %c3_i32_135 = arith.constant 3 : i32
    %218 = arith.addi %217, %c3_i32_135 : i32
    %219 = arith.index_cast %218 : i32 to index
    %220 = memref.load %arg1[%219] : memref<32xi32, #tpu.memory_space<smem>>
    %c27_i32 = arith.constant 27 : i32
    %c0_i32_136 = arith.constant 0 : i32
    %221 = tpu.memref_slice %arg2[%220, %c0_i32_136] : memref<64x128xf32, #tpu.memory_space<any>> -> memref<1x128xf32, #tpu.memory_space<any>>
    %c27_i32_137 = arith.constant 27 : i32
    %c0_i32_138 = arith.constant 0 : i32
    %222 = tpu.memref_slice %arg4[%c27_i32_137, %c0_i32_138] : memref<32x128xf32, #tpu.memory_space<vmem>> -> memref<1x128xf32, #tpu.memory_space<vmem>>
    %223 = tpu.memref_slice %arg5[%c27_i32] : memref<32x!tpu.dma_semaphore, #tpu.memory_space<semaphore_mem>> -> memref<1x!tpu.dma_semaphore, #tpu.memory_space<semaphore_mem>>
    %224 = tpu.memref_squeeze %223 : memref<1x!tpu.dma_semaphore, #tpu.memory_space<semaphore_mem>> -> memref<!tpu.dma_semaphore, #tpu.memory_space<semaphore_mem>>
    tpu.enqueue_dma source(%221 : memref<1x128xf32, #tpu.memory_space<any>>) target(%222 : memref<1x128xf32, #tpu.memory_space<vmem>>) target_semaphore(%224 : memref<!tpu.dma_semaphore, #tpu.memory_space<semaphore_mem>>)
    %c16_i32_139 = arith.constant 16 : i32
    %225 = arith.addi %0, %c16_i32_139 : i32
    %c3_i32_140 = arith.constant 3 : i32
    %226 = arith.addi %225, %c3_i32_140 : i32
    %227 = arith.index_cast %226 : i32 to index
    %228 = memref.load %arg1[%227] : memref<32xi32, #tpu.memory_space<smem>>
    %c28_i32_141 = arith.constant 28 : i32
    %c0_i32_142 = arith.constant 0 : i32
    %229 = tpu.memref_slice %arg2[%228, %c0_i32_142] : memref<64x128xf32, #tpu.memory_space<any>> -> memref<1x128xf32, #tpu.memory_space<any>>
    %c28_i32_143 = arith.constant 28 : i32
    %c0_i32_144 = arith.constant 0 : i32
    %230 = tpu.memref_slice %arg4[%c28_i32_143, %c0_i32_144] : memref<32x128xf32, #tpu.memory_space<vmem>> -> memref<1x128xf32, #tpu.memory_space<vmem>>
    %231 = tpu.memref_slice %arg5[%c28_i32_141] : memref<32x!tpu.dma_semaphore, #tpu.memory_space<semaphore_mem>> -> memref<1x!tpu.dma_semaphore, #tpu.memory_space<semaphore_mem>>
    %232 = tpu.memref_squeeze %231 : memref<1x!tpu.dma_semaphore, #tpu.memory_space<semaphore_mem>> -> memref<!tpu.dma_semaphore, #tpu.memory_space<semaphore_mem>>
    tpu.enqueue_dma source(%229 : memref<1x128xf32, #tpu.memory_space<any>>) target(%230 : memref<1x128xf32, #tpu.memory_space<vmem>>) target_semaphore(%232 : memref<!tpu.dma_semaphore, #tpu.memory_space<semaphore_mem>>)
    %c20_i32_145 = arith.constant 20 : i32
    %233 = arith.addi %0, %c20_i32_145 : i32
    %c3_i32_146 = arith.constant 3 : i32
    %234 = arith.addi %233, %c3_i32_146 : i32
    %235 = arith.index_cast %234 : i32 to index
    %236 = memref.load %arg1[%235] : memref<32xi32, #tpu.memory_space<smem>>
    %c29_i32 = arith.constant 29 : i32
    %c0_i32_147 = arith.constant 0 : i32
    %237 = tpu.memref_slice %arg2[%236, %c0_i32_147] : memref<64x128xf32, #tpu.memory_space<any>> -> memref<1x128xf32, #tpu.memory_space<any>>
    %c29_i32_148 = arith.constant 29 : i32
    %c0_i32_149 = arith.constant 0 : i32
    %238 = tpu.memref_slice %arg4[%c29_i32_148, %c0_i32_149] : memref<32x128xf32, #tpu.memory_space<vmem>> -> memref<1x128xf32, #tpu.memory_space<vmem>>
    %239 = tpu.memref_slice %arg5[%c29_i32] : memref<32x!tpu.dma_semaphore, #tpu.memory_space<semaphore_mem>> -> memref<1x!tpu.dma_semaphore, #tpu.memory_space<semaphore_mem>>
    %240 = tpu.memref_squeeze %239 : memref<1x!tpu.dma_semaphore, #tpu.memory_space<semaphore_mem>> -> memref<!tpu.dma_semaphore, #tpu.memory_space<semaphore_mem>>
    tpu.enqueue_dma source(%237 : memref<1x128xf32, #tpu.memory_space<any>>) target(%238 : memref<1x128xf32, #tpu.memory_space<vmem>>) target_semaphore(%240 : memref<!tpu.dma_semaphore, #tpu.memory_space<semaphore_mem>>)
    %c24_i32_150 = arith.constant 24 : i32
    %241 = arith.addi %0, %c24_i32_150 : i32
    %c3_i32_151 = arith.constant 3 : i32
    %242 = arith.addi %241, %c3_i32_151 : i32
    %243 = arith.index_cast %242 : i32 to index
    %244 = memref.load %arg1[%243] : memref<32xi32, #tpu.memory_space<smem>>
    %c30_i32 = arith.constant 30 : i32
    %c0_i32_152 = arith.constant 0 : i32
    %245 = tpu.memref_slice %arg2[%244, %c0_i32_152] : memref<64x128xf32, #tpu.memory_space<any>> -> memref<1x128xf32, #tpu.memory_space<any>>
    %c30_i32_153 = arith.constant 30 : i32
    %c0_i32_154 = arith.constant 0 : i32
    %246 = tpu.memref_slice %arg4[%c30_i32_153, %c0_i32_154] : memref<32x128xf32, #tpu.memory_space<vmem>> -> memref<1x128xf32, #tpu.memory_space<vmem>>
    %247 = tpu.memref_slice %arg5[%c30_i32] : memref<32x!tpu.dma_semaphore, #tpu.memory_space<semaphore_mem>> -> memref<1x!tpu.dma_semaphore, #tpu.memory_space<semaphore_mem>>
    %248 = tpu.memref_squeeze %247 : memref<1x!tpu.dma_semaphore, #tpu.memory_space<semaphore_mem>> -> memref<!tpu.dma_semaphore, #tpu.memory_space<semaphore_mem>>
    tpu.enqueue_dma source(%245 : memref<1x128xf32, #tpu.memory_space<any>>) target(%246 : memref<1x128xf32, #tpu.memory_space<vmem>>) target_semaphore(%248 : memref<!tpu.dma_semaphore, #tpu.memory_space<semaphore_mem>>)
    %c28_i32_155 = arith.constant 28 : i32
    %249 = arith.addi %0, %c28_i32_155 : i32
    %c3_i32_156 = arith.constant 3 : i32
    %250 = arith.addi %249, %c3_i32_156 : i32
    %251 = arith.index_cast %250 : i32 to index
    %252 = memref.load %arg1[%251] : memref<32xi32, #tpu.memory_space<smem>>
    %c31_i32 = arith.constant 31 : i32
    %c0_i32_157 = arith.constant 0 : i32
    %253 = tpu.memref_slice %arg2[%252, %c0_i32_157] : memref<64x128xf32, #tpu.memory_space<any>> -> memref<1x128xf32, #tpu.memory_space<any>>
    %c31_i32_158 = arith.constant 31 : i32
    %c0_i32_159 = arith.constant 0 : i32
    %254 = tpu.memref_slice %arg4[%c31_i32_158, %c0_i32_159] : memref<32x128xf32, #tpu.memory_space<vmem>> -> memref<1x128xf32, #tpu.memory_space<vmem>>
    %255 = tpu.memref_slice %arg5[%c31_i32] : memref<32x!tpu.dma_semaphore, #tpu.memory_space<semaphore_mem>> -> memref<1x!tpu.dma_semaphore, #tpu.memory_space<semaphore_mem>>
    %256 = tpu.memref_squeeze %255 : memref<1x!tpu.dma_semaphore, #tpu.memory_space<semaphore_mem>> -> memref<!tpu.dma_semaphore, #tpu.memory_space<semaphore_mem>>
    tpu.enqueue_dma source(%253 : memref<1x128xf32, #tpu.memory_space<any>>) target(%254 : memref<1x128xf32, #tpu.memory_space<vmem>>) target_semaphore(%256 : memref<!tpu.dma_semaphore, #tpu.memory_space<semaphore_mem>>)
    %c0_i32_160 = arith.constant 0 : i32
    %c0_i32_161 = arith.constant 0 : i32
    %257 = tpu.memref_slice %arg2[%4, %c0_i32_161] : memref<64x128xf32, #tpu.memory_space<any>> -> memref<1x128xf32, #tpu.memory_space<any>>
    %c0_i32_162 = arith.constant 0 : i32
    %c0_i32_163 = arith.constant 0 : i32
    %258 = tpu.memref_slice %arg4[%c0_i32_162, %c0_i32_163] : memref<32x128xf32, #tpu.memory_space<vmem>> -> memref<1x128xf32, #tpu.memory_space<vmem>>
    %259 = tpu.memref_slice %arg5[%c0_i32_160] : memref<32x!tpu.dma_semaphore, #tpu.memory_space<semaphore_mem>> -> memref<1x!tpu.dma_semaphore, #tpu.memory_space<semaphore_mem>>
    %260 = tpu.memref_squeeze %259 : memref<1x!tpu.dma_semaphore, #tpu.memory_space<semaphore_mem>> -> memref<!tpu.dma_semaphore, #tpu.memory_space<semaphore_mem>>
    tpu.wait_dma2 semaphore(%260 : memref<!tpu.dma_semaphore, #tpu.memory_space<semaphore_mem>>) src(%257 : memref<1x128xf32, #tpu.memory_space<any>>) dst(%258 : memref<1x128xf32, #tpu.memory_space<vmem>>)
    %c1_i32_164 = arith.constant 1 : i32
    %c0_i32_165 = arith.constant 0 : i32
    %261 = tpu.memref_slice %arg2[%12, %c0_i32_165] : memref<64x128xf32, #tpu.memory_space<any>> -> memref<1x128xf32, #tpu.memory_space<any>>
    %c1_i32_166 = arith.constant 1 : i32
    %c0_i32_167 = arith.constant 0 : i32
    %262 = tpu.memref_slice %arg4[%c1_i32_166, %c0_i32_167] : memref<32x128xf32, #tpu.memory_space<vmem>> -> memref<1x128xf32, #tpu.memory_space<vmem>>
    %263 = tpu.memref_slice %arg5[%c1_i32_164] : memref<32x!tpu.dma_semaphore, #tpu.memory_space<semaphore_mem>> -> memref<1x!tpu.dma_semaphore, #tpu.memory_space<semaphore_mem>>
    %264 = tpu.memref_squeeze %263 : memref<1x!tpu.dma_semaphore, #tpu.memory_space<semaphore_mem>> -> memref<!tpu.dma_semaphore, #tpu.memory_space<semaphore_mem>>
    tpu.wait_dma2 semaphore(%264 : memref<!tpu.dma_semaphore, #tpu.memory_space<semaphore_mem>>) src(%261 : memref<1x128xf32, #tpu.memory_space<any>>) dst(%262 : memref<1x128xf32, #tpu.memory_space<vmem>>)
    %c2_i32_168 = arith.constant 2 : i32
    %c0_i32_169 = arith.constant 0 : i32
    %265 = tpu.memref_slice %arg2[%20, %c0_i32_169] : memref<64x128xf32, #tpu.memory_space<any>> -> memref<1x128xf32, #tpu.memory_space<any>>
    %c2_i32_170 = arith.constant 2 : i32
    %c0_i32_171 = arith.constant 0 : i32
    %266 = tpu.memref_slice %arg4[%c2_i32_170, %c0_i32_171] : memref<32x128xf32, #tpu.memory_space<vmem>> -> memref<1x128xf32, #tpu.memory_space<vmem>>
    %267 = tpu.memref_slice %arg5[%c2_i32_168] : memref<32x!tpu.dma_semaphore, #tpu.memory_space<semaphore_mem>> -> memref<1x!tpu.dma_semaphore, #tpu.memory_space<semaphore_mem>>
    %268 = tpu.memref_squeeze %267 : memref<1x!tpu.dma_semaphore, #tpu.memory_space<semaphore_mem>> -> memref<!tpu.dma_semaphore, #tpu.memory_space<semaphore_mem>>
    tpu.wait_dma2 semaphore(%268 : memref<!tpu.dma_semaphore, #tpu.memory_space<semaphore_mem>>) src(%265 : memref<1x128xf32, #tpu.memory_space<any>>) dst(%266 : memref<1x128xf32, #tpu.memory_space<vmem>>)
    %c3_i32_172 = arith.constant 3 : i32
    %c0_i32_173 = arith.constant 0 : i32
    %269 = tpu.memref_slice %arg2[%28, %c0_i32_173] : memref<64x128xf32, #tpu.memory_space<any>> -> memref<1x128xf32, #tpu.memory_space<any>>
    %c3_i32_174 = arith.constant 3 : i32
    %c0_i32_175 = arith.constant 0 : i32
    %270 = tpu.memref_slice %arg4[%c3_i32_174, %c0_i32_175] : memref<32x128xf32, #tpu.memory_space<vmem>> -> memref<1x128xf32, #tpu.memory_space<vmem>>
    %271 = tpu.memref_slice %arg5[%c3_i32_172] : memref<32x!tpu.dma_semaphore, #tpu.memory_space<semaphore_mem>> -> memref<1x!tpu.dma_semaphore, #tpu.memory_space<semaphore_mem>>
    %272 = tpu.memref_squeeze %271 : memref<1x!tpu.dma_semaphore, #tpu.memory_space<semaphore_mem>> -> memref<!tpu.dma_semaphore, #tpu.memory_space<semaphore_mem>>
    tpu.wait_dma2 semaphore(%272 : memref<!tpu.dma_semaphore, #tpu.memory_space<semaphore_mem>>) src(%269 : memref<1x128xf32, #tpu.memory_space<any>>) dst(%270 : memref<1x128xf32, #tpu.memory_space<vmem>>)
    %c4_i32_176 = arith.constant 4 : i32
    %c0_i32_177 = arith.constant 0 : i32
    %273 = tpu.memref_slice %arg2[%36, %c0_i32_177] : memref<64x128xf32, #tpu.memory_space<any>> -> memref<1x128xf32, #tpu.memory_space<any>>
    %c4_i32_178 = arith.constant 4 : i32
    %c0_i32_179 = arith.constant 0 : i32
    %274 = tpu.memref_slice %arg4[%c4_i32_178, %c0_i32_179] : memref<32x128xf32, #tpu.memory_space<vmem>> -> memref<1x128xf32, #tpu.memory_space<vmem>>
    %275 = tpu.memref_slice %arg5[%c4_i32_176] : memref<32x!tpu.dma_semaphore, #tpu.memory_space<semaphore_mem>> -> memref<1x!tpu.dma_semaphore, #tpu.memory_space<semaphore_mem>>
    %276 = tpu.memref_squeeze %275 : memref<1x!tpu.dma_semaphore, #tpu.memory_space<semaphore_mem>> -> memref<!tpu.dma_semaphore, #tpu.memory_space<semaphore_mem>>
    tpu.wait_dma2 semaphore(%276 : memref<!tpu.dma_semaphore, #tpu.memory_space<semaphore_mem>>) src(%273 : memref<1x128xf32, #tpu.memory_space<any>>) dst(%274 : memref<1x128xf32, #tpu.memory_space<vmem>>)
    %c5_i32_180 = arith.constant 5 : i32
    %c0_i32_181 = arith.constant 0 : i32
    %277 = tpu.memref_slice %arg2[%44, %c0_i32_181] : memref<64x128xf32, #tpu.memory_space<any>> -> memref<1x128xf32, #tpu.memory_space<any>>
    %c5_i32_182 = arith.constant 5 : i32
    %c0_i32_183 = arith.constant 0 : i32
    %278 = tpu.memref_slice %arg4[%c5_i32_182, %c0_i32_183] : memref<32x128xf32, #tpu.memory_space<vmem>> -> memref<1x128xf32, #tpu.memory_space<vmem>>
    %279 = tpu.memref_slice %arg5[%c5_i32_180] : memref<32x!tpu.dma_semaphore, #tpu.memory_space<semaphore_mem>> -> memref<1x!tpu.dma_semaphore, #tpu.memory_space<semaphore_mem>>
    %280 = tpu.memref_squeeze %279 : memref<1x!tpu.dma_semaphore, #tpu.memory_space<semaphore_mem>> -> memref<!tpu.dma_semaphore, #tpu.memory_space<semaphore_mem>>
    tpu.wait_dma2 semaphore(%280 : memref<!tpu.dma_semaphore, #tpu.memory_space<semaphore_mem>>) src(%277 : memref<1x128xf32, #tpu.memory_space<any>>) dst(%278 : memref<1x128xf32, #tpu.memory_space<vmem>>)
    %c6_i32_184 = arith.constant 6 : i32
    %c0_i32_185 = arith.constant 0 : i32
    %281 = tpu.memref_slice %arg2[%52, %c0_i32_185] : memref<64x128xf32, #tpu.memory_space<any>> -> memref<1x128xf32, #tpu.memory_space<any>>
    %c6_i32_186 = arith.constant 6 : i32
    %c0_i32_187 = arith.constant 0 : i32
    %282 = tpu.memref_slice %arg4[%c6_i32_186, %c0_i32_187] : memref<32x128xf32, #tpu.memory_space<vmem>> -> memref<1x128xf32, #tpu.memory_space<vmem>>
    %283 = tpu.memref_slice %arg5[%c6_i32_184] : memref<32x!tpu.dma_semaphore, #tpu.memory_space<semaphore_mem>> -> memref<1x!tpu.dma_semaphore, #tpu.memory_space<semaphore_mem>>
    %284 = tpu.memref_squeeze %283 : memref<1x!tpu.dma_semaphore, #tpu.memory_space<semaphore_mem>> -> memref<!tpu.dma_semaphore, #tpu.memory_space<semaphore_mem>>
    tpu.wait_dma2 semaphore(%284 : memref<!tpu.dma_semaphore, #tpu.memory_space<semaphore_mem>>) src(%281 : memref<1x128xf32, #tpu.memory_space<any>>) dst(%282 : memref<1x128xf32, #tpu.memory_space<vmem>>)
    %c7_i32_188 = arith.constant 7 : i32
    %c0_i32_189 = arith.constant 0 : i32
    %285 = tpu.memref_slice %arg2[%60, %c0_i32_189] : memref<64x128xf32, #tpu.memory_space<any>> -> memref<1x128xf32, #tpu.memory_space<any>>
    %c7_i32_190 = arith.constant 7 : i32
    %c0_i32_191 = arith.constant 0 : i32
    %286 = tpu.memref_slice %arg4[%c7_i32_190, %c0_i32_191] : memref<32x128xf32, #tpu.memory_space<vmem>> -> memref<1x128xf32, #tpu.memory_space<vmem>>
    %287 = tpu.memref_slice %arg5[%c7_i32_188] : memref<32x!tpu.dma_semaphore, #tpu.memory_space<semaphore_mem>> -> memref<1x!tpu.dma_semaphore, #tpu.memory_space<semaphore_mem>>
    %288 = tpu.memref_squeeze %287 : memref<1x!tpu.dma_semaphore, #tpu.memory_space<semaphore_mem>> -> memref<!tpu.dma_semaphore, #tpu.memory_space<semaphore_mem>>
    tpu.wait_dma2 semaphore(%288 : memref<!tpu.dma_semaphore, #tpu.memory_space<semaphore_mem>>) src(%285 : memref<1x128xf32, #tpu.memory_space<any>>) dst(%286 : memref<1x128xf32, #tpu.memory_space<vmem>>)
    %c8_i32_192 = arith.constant 8 : i32
    %c0_i32_193 = arith.constant 0 : i32
    %289 = tpu.memref_slice %arg2[%68, %c0_i32_193] : memref<64x128xf32, #tpu.memory_space<any>> -> memref<1x128xf32, #tpu.memory_space<any>>
    %c8_i32_194 = arith.constant 8 : i32
    %c0_i32_195 = arith.constant 0 : i32
    %290 = tpu.memref_slice %arg4[%c8_i32_194, %c0_i32_195] : memref<32x128xf32, #tpu.memory_space<vmem>> -> memref<1x128xf32, #tpu.memory_space<vmem>>
    %291 = tpu.memref_slice %arg5[%c8_i32_192] : memref<32x!tpu.dma_semaphore, #tpu.memory_space<semaphore_mem>> -> memref<1x!tpu.dma_semaphore, #tpu.memory_space<semaphore_mem>>
    %292 = tpu.memref_squeeze %291 : memref<1x!tpu.dma_semaphore, #tpu.memory_space<semaphore_mem>> -> memref<!tpu.dma_semaphore, #tpu.memory_space<semaphore_mem>>
    tpu.wait_dma2 semaphore(%292 : memref<!tpu.dma_semaphore, #tpu.memory_space<semaphore_mem>>) src(%289 : memref<1x128xf32, #tpu.memory_space<any>>) dst(%290 : memref<1x128xf32, #tpu.memory_space<vmem>>)
    %c9_i32_196 = arith.constant 9 : i32
    %c0_i32_197 = arith.constant 0 : i32
    %293 = tpu.memref_slice %arg2[%76, %c0_i32_197] : memref<64x128xf32, #tpu.memory_space<any>> -> memref<1x128xf32, #tpu.memory_space<any>>
    %c9_i32_198 = arith.constant 9 : i32
    %c0_i32_199 = arith.constant 0 : i32
    %294 = tpu.memref_slice %arg4[%c9_i32_198, %c0_i32_199] : memref<32x128xf32, #tpu.memory_space<vmem>> -> memref<1x128xf32, #tpu.memory_space<vmem>>
    %295 = tpu.memref_slice %arg5[%c9_i32_196] : memref<32x!tpu.dma_semaphore, #tpu.memory_space<semaphore_mem>> -> memref<1x!tpu.dma_semaphore, #tpu.memory_space<semaphore_mem>>
    %296 = tpu.memref_squeeze %295 : memref<1x!tpu.dma_semaphore, #tpu.memory_space<semaphore_mem>> -> memref<!tpu.dma_semaphore, #tpu.memory_space<semaphore_mem>>
    tpu.wait_dma2 semaphore(%296 : memref<!tpu.dma_semaphore, #tpu.memory_space<semaphore_mem>>) src(%293 : memref<1x128xf32, #tpu.memory_space<any>>) dst(%294 : memref<1x128xf32, #tpu.memory_space<vmem>>)
    %c10_i32_200 = arith.constant 10 : i32
    %c0_i32_201 = arith.constant 0 : i32
    %297 = tpu.memref_slice %arg2[%84, %c0_i32_201] : memref<64x128xf32, #tpu.memory_space<any>> -> memref<1x128xf32, #tpu.memory_space<any>>
    %c10_i32_202 = arith.constant 10 : i32
    %c0_i32_203 = arith.constant 0 : i32
    %298 = tpu.memref_slice %arg4[%c10_i32_202, %c0_i32_203] : memref<32x128xf32, #tpu.memory_space<vmem>> -> memref<1x128xf32, #tpu.memory_space<vmem>>
    %299 = tpu.memref_slice %arg5[%c10_i32_200] : memref<32x!tpu.dma_semaphore, #tpu.memory_space<semaphore_mem>> -> memref<1x!tpu.dma_semaphore, #tpu.memory_space<semaphore_mem>>
    %300 = tpu.memref_squeeze %299 : memref<1x!tpu.dma_semaphore, #tpu.memory_space<semaphore_mem>> -> memref<!tpu.dma_semaphore, #tpu.memory_space<semaphore_mem>>
    tpu.wait_dma2 semaphore(%300 : memref<!tpu.dma_semaphore, #tpu.memory_space<semaphore_mem>>) src(%297 : memref<1x128xf32, #tpu.memory_space<any>>) dst(%298 : memref<1x128xf32, #tpu.memory_space<vmem>>)
    %c11_i32_204 = arith.constant 11 : i32
    %c0_i32_205 = arith.constant 0 : i32
    %301 = tpu.memref_slice %arg2[%92, %c0_i32_205] : memref<64x128xf32, #tpu.memory_space<any>> -> memref<1x128xf32, #tpu.memory_space<any>>
    %c11_i32_206 = arith.constant 11 : i32
    %c0_i32_207 = arith.constant 0 : i32
    %302 = tpu.memref_slice %arg4[%c11_i32_206, %c0_i32_207] : memref<32x128xf32, #tpu.memory_space<vmem>> -> memref<1x128xf32, #tpu.memory_space<vmem>>
    %303 = tpu.memref_slice %arg5[%c11_i32_204] : memref<32x!tpu.dma_semaphore, #tpu.memory_space<semaphore_mem>> -> memref<1x!tpu.dma_semaphore, #tpu.memory_space<semaphore_mem>>
    %304 = tpu.memref_squeeze %303 : memref<1x!tpu.dma_semaphore, #tpu.memory_space<semaphore_mem>> -> memref<!tpu.dma_semaphore, #tpu.memory_space<semaphore_mem>>
    tpu.wait_dma2 semaphore(%304 : memref<!tpu.dma_semaphore, #tpu.memory_space<semaphore_mem>>) src(%301 : memref<1x128xf32, #tpu.memory_space<any>>) dst(%302 : memref<1x128xf32, #tpu.memory_space<vmem>>)
    %c12_i32_208 = arith.constant 12 : i32
    %c0_i32_209 = arith.constant 0 : i32
    %305 = tpu.memref_slice %arg2[%100, %c0_i32_209] : memref<64x128xf32, #tpu.memory_space<any>> -> memref<1x128xf32, #tpu.memory_space<any>>
    %c12_i32_210 = arith.constant 12 : i32
    %c0_i32_211 = arith.constant 0 : i32
    %306 = tpu.memref_slice %arg4[%c12_i32_210, %c0_i32_211] : memref<32x128xf32, #tpu.memory_space<vmem>> -> memref<1x128xf32, #tpu.memory_space<vmem>>
    %307 = tpu.memref_slice %arg5[%c12_i32_208] : memref<32x!tpu.dma_semaphore, #tpu.memory_space<semaphore_mem>> -> memref<1x!tpu.dma_semaphore, #tpu.memory_space<semaphore_mem>>
    %308 = tpu.memref_squeeze %307 : memref<1x!tpu.dma_semaphore, #tpu.memory_space<semaphore_mem>> -> memref<!tpu.dma_semaphore, #tpu.memory_space<semaphore_mem>>
    tpu.wait_dma2 semaphore(%308 : memref<!tpu.dma_semaphore, #tpu.memory_space<semaphore_mem>>) src(%305 : memref<1x128xf32, #tpu.memory_space<any>>) dst(%306 : memref<1x128xf32, #tpu.memory_space<vmem>>)
    %c13_i32_212 = arith.constant 13 : i32
    %c0_i32_213 = arith.constant 0 : i32
    %309 = tpu.memref_slice %arg2[%108, %c0_i32_213] : memref<64x128xf32, #tpu.memory_space<any>> -> memref<1x128xf32, #tpu.memory_space<any>>
    %c13_i32_214 = arith.constant 13 : i32
    %c0_i32_215 = arith.constant 0 : i32
    %310 = tpu.memref_slice %arg4[%c13_i32_214, %c0_i32_215] : memref<32x128xf32, #tpu.memory_space<vmem>> -> memref<1x128xf32, #tpu.memory_space<vmem>>
    %311 = tpu.memref_slice %arg5[%c13_i32_212] : memref<32x!tpu.dma_semaphore, #tpu.memory_space<semaphore_mem>> -> memref<1x!tpu.dma_semaphore, #tpu.memory_space<semaphore_mem>>
    %312 = tpu.memref_squeeze %311 : memref<1x!tpu.dma_semaphore, #tpu.memory_space<semaphore_mem>> -> memref<!tpu.dma_semaphore, #tpu.memory_space<semaphore_mem>>
    tpu.wait_dma2 semaphore(%312 : memref<!tpu.dma_semaphore, #tpu.memory_space<semaphore_mem>>) src(%309 : memref<1x128xf32, #tpu.memory_space<any>>) dst(%310 : memref<1x128xf32, #tpu.memory_space<vmem>>)
    %c14_i32_216 = arith.constant 14 : i32
    %c0_i32_217 = arith.constant 0 : i32
    %313 = tpu.memref_slice %arg2[%116, %c0_i32_217] : memref<64x128xf32, #tpu.memory_space<any>> -> memref<1x128xf32, #tpu.memory_space<any>>
    %c14_i32_218 = arith.constant 14 : i32
    %c0_i32_219 = arith.constant 0 : i32
    %314 = tpu.memref_slice %arg4[%c14_i32_218, %c0_i32_219] : memref<32x128xf32, #tpu.memory_space<vmem>> -> memref<1x128xf32, #tpu.memory_space<vmem>>
    %315 = tpu.memref_slice %arg5[%c14_i32_216] : memref<32x!tpu.dma_semaphore, #tpu.memory_space<semaphore_mem>> -> memref<1x!tpu.dma_semaphore, #tpu.memory_space<semaphore_mem>>
    %316 = tpu.memref_squeeze %315 : memref<1x!tpu.dma_semaphore, #tpu.memory_space<semaphore_mem>> -> memref<!tpu.dma_semaphore, #tpu.memory_space<semaphore_mem>>
    tpu.wait_dma2 semaphore(%316 : memref<!tpu.dma_semaphore, #tpu.memory_space<semaphore_mem>>) src(%313 : memref<1x128xf32, #tpu.memory_space<any>>) dst(%314 : memref<1x128xf32, #tpu.memory_space<vmem>>)
    %c15_i32_220 = arith.constant 15 : i32
    %c0_i32_221 = arith.constant 0 : i32
    %317 = tpu.memref_slice %arg2[%124, %c0_i32_221] : memref<64x128xf32, #tpu.memory_space<any>> -> memref<1x128xf32, #tpu.memory_space<any>>
    %c15_i32_222 = arith.constant 15 : i32
    %c0_i32_223 = arith.constant 0 : i32
    %318 = tpu.memref_slice %arg4[%c15_i32_222, %c0_i32_223] : memref<32x128xf32, #tpu.memory_space<vmem>> -> memref<1x128xf32, #tpu.memory_space<vmem>>
    %319 = tpu.memref_slice %arg5[%c15_i32_220] : memref<32x!tpu.dma_semaphore, #tpu.memory_space<semaphore_mem>> -> memref<1x!tpu.dma_semaphore, #tpu.memory_space<semaphore_mem>>
    %320 = tpu.memref_squeeze %319 : memref<1x!tpu.dma_semaphore, #tpu.memory_space<semaphore_mem>> -> memref<!tpu.dma_semaphore, #tpu.memory_space<semaphore_mem>>
    tpu.wait_dma2 semaphore(%320 : memref<!tpu.dma_semaphore, #tpu.memory_space<semaphore_mem>>) src(%317 : memref<1x128xf32, #tpu.memory_space<any>>) dst(%318 : memref<1x128xf32, #tpu.memory_space<vmem>>)
    %c16_i32_224 = arith.constant 16 : i32
    %c0_i32_225 = arith.constant 0 : i32
    %321 = tpu.memref_slice %arg2[%132, %c0_i32_225] : memref<64x128xf32, #tpu.memory_space<any>> -> memref<1x128xf32, #tpu.memory_space<any>>
    %c16_i32_226 = arith.constant 16 : i32
    %c0_i32_227 = arith.constant 0 : i32
    %322 = tpu.memref_slice %arg4[%c16_i32_226, %c0_i32_227] : memref<32x128xf32, #tpu.memory_space<vmem>> -> memref<1x128xf32, #tpu.memory_space<vmem>>
    %323 = tpu.memref_slice %arg5[%c16_i32_224] : memref<32x!tpu.dma_semaphore, #tpu.memory_space<semaphore_mem>> -> memref<1x!tpu.dma_semaphore, #tpu.memory_space<semaphore_mem>>
    %324 = tpu.memref_squeeze %323 : memref<1x!tpu.dma_semaphore, #tpu.memory_space<semaphore_mem>> -> memref<!tpu.dma_semaphore, #tpu.memory_space<semaphore_mem>>
    tpu.wait_dma2 semaphore(%324 : memref<!tpu.dma_semaphore, #tpu.memory_space<semaphore_mem>>) src(%321 : memref<1x128xf32, #tpu.memory_space<any>>) dst(%322 : memref<1x128xf32, #tpu.memory_space<vmem>>)
    %c17_i32_228 = arith.constant 17 : i32
    %c0_i32_229 = arith.constant 0 : i32
    %325 = tpu.memref_slice %arg2[%140, %c0_i32_229] : memref<64x128xf32, #tpu.memory_space<any>> -> memref<1x128xf32, #tpu.memory_space<any>>
    %c17_i32_230 = arith.constant 17 : i32
    %c0_i32_231 = arith.constant 0 : i32
    %326 = tpu.memref_slice %arg4[%c17_i32_230, %c0_i32_231] : memref<32x128xf32, #tpu.memory_space<vmem>> -> memref<1x128xf32, #tpu.memory_space<vmem>>
    %327 = tpu.memref_slice %arg5[%c17_i32_228] : memref<32x!tpu.dma_semaphore, #tpu.memory_space<semaphore_mem>> -> memref<1x!tpu.dma_semaphore, #tpu.memory_space<semaphore_mem>>
    %328 = tpu.memref_squeeze %327 : memref<1x!tpu.dma_semaphore, #tpu.memory_space<semaphore_mem>> -> memref<!tpu.dma_semaphore, #tpu.memory_space<semaphore_mem>>
    tpu.wait_dma2 semaphore(%328 : memref<!tpu.dma_semaphore, #tpu.memory_space<semaphore_mem>>) src(%325 : memref<1x128xf32, #tpu.memory_space<any>>) dst(%326 : memref<1x128xf32, #tpu.memory_space<vmem>>)
    %c18_i32_232 = arith.constant 18 : i32
    %c0_i32_233 = arith.constant 0 : i32
    %329 = tpu.memref_slice %arg2[%148, %c0_i32_233] : memref<64x128xf32, #tpu.memory_space<any>> -> memref<1x128xf32, #tpu.memory_space<any>>
    %c18_i32_234 = arith.constant 18 : i32
    %c0_i32_235 = arith.constant 0 : i32
    %330 = tpu.memref_slice %arg4[%c18_i32_234, %c0_i32_235] : memref<32x128xf32, #tpu.memory_space<vmem>> -> memref<1x128xf32, #tpu.memory_space<vmem>>
    %331 = tpu.memref_slice %arg5[%c18_i32_232] : memref<32x!tpu.dma_semaphore, #tpu.memory_space<semaphore_mem>> -> memref<1x!tpu.dma_semaphore, #tpu.memory_space<semaphore_mem>>
    %332 = tpu.memref_squeeze %331 : memref<1x!tpu.dma_semaphore, #tpu.memory_space<semaphore_mem>> -> memref<!tpu.dma_semaphore, #tpu.memory_space<semaphore_mem>>
    tpu.wait_dma2 semaphore(%332 : memref<!tpu.dma_semaphore, #tpu.memory_space<semaphore_mem>>) src(%329 : memref<1x128xf32, #tpu.memory_space<any>>) dst(%330 : memref<1x128xf32, #tpu.memory_space<vmem>>)
    %c19_i32_236 = arith.constant 19 : i32
    %c0_i32_237 = arith.constant 0 : i32
    %333 = tpu.memref_slice %arg2[%156, %c0_i32_237] : memref<64x128xf32, #tpu.memory_space<any>> -> memref<1x128xf32, #tpu.memory_space<any>>
    %c19_i32_238 = arith.constant 19 : i32
    %c0_i32_239 = arith.constant 0 : i32
    %334 = tpu.memref_slice %arg4[%c19_i32_238, %c0_i32_239] : memref<32x128xf32, #tpu.memory_space<vmem>> -> memref<1x128xf32, #tpu.memory_space<vmem>>
    %335 = tpu.memref_slice %arg5[%c19_i32_236] : memref<32x!tpu.dma_semaphore, #tpu.memory_space<semaphore_mem>> -> memref<1x!tpu.dma_semaphore, #tpu.memory_space<semaphore_mem>>
    %336 = tpu.memref_squeeze %335 : memref<1x!tpu.dma_semaphore, #tpu.memory_space<semaphore_mem>> -> memref<!tpu.dma_semaphore, #tpu.memory_space<semaphore_mem>>
    tpu.wait_dma2 semaphore(%336 : memref<!tpu.dma_semaphore, #tpu.memory_space<semaphore_mem>>) src(%333 : memref<1x128xf32, #tpu.memory_space<any>>) dst(%334 : memref<1x128xf32, #tpu.memory_space<vmem>>)
    %c20_i32_240 = arith.constant 20 : i32
    %c0_i32_241 = arith.constant 0 : i32
    %337 = tpu.memref_slice %arg2[%164, %c0_i32_241] : memref<64x128xf32, #tpu.memory_space<any>> -> memref<1x128xf32, #tpu.memory_space<any>>
    %c20_i32_242 = arith.constant 20 : i32
    %c0_i32_243 = arith.constant 0 : i32
    %338 = tpu.memref_slice %arg4[%c20_i32_242, %c0_i32_243] : memref<32x128xf32, #tpu.memory_space<vmem>> -> memref<1x128xf32, #tpu.memory_space<vmem>>
    %339 = tpu.memref_slice %arg5[%c20_i32_240] : memref<32x!tpu.dma_semaphore, #tpu.memory_space<semaphore_mem>> -> memref<1x!tpu.dma_semaphore, #tpu.memory_space<semaphore_mem>>
    %340 = tpu.memref_squeeze %339 : memref<1x!tpu.dma_semaphore, #tpu.memory_space<semaphore_mem>> -> memref<!tpu.dma_semaphore, #tpu.memory_space<semaphore_mem>>
    tpu.wait_dma2 semaphore(%340 : memref<!tpu.dma_semaphore, #tpu.memory_space<semaphore_mem>>) src(%337 : memref<1x128xf32, #tpu.memory_space<any>>) dst(%338 : memref<1x128xf32, #tpu.memory_space<vmem>>)
    %c21_i32_244 = arith.constant 21 : i32
    %c0_i32_245 = arith.constant 0 : i32
    %341 = tpu.memref_slice %arg2[%172, %c0_i32_245] : memref<64x128xf32, #tpu.memory_space<any>> -> memref<1x128xf32, #tpu.memory_space<any>>
    %c21_i32_246 = arith.constant 21 : i32
    %c0_i32_247 = arith.constant 0 : i32
    %342 = tpu.memref_slice %arg4[%c21_i32_246, %c0_i32_247] : memref<32x128xf32, #tpu.memory_space<vmem>> -> memref<1x128xf32, #tpu.memory_space<vmem>>
    %343 = tpu.memref_slice %arg5[%c21_i32_244] : memref<32x!tpu.dma_semaphore, #tpu.memory_space<semaphore_mem>> -> memref<1x!tpu.dma_semaphore, #tpu.memory_space<semaphore_mem>>
    %344 = tpu.memref_squeeze %343 : memref<1x!tpu.dma_semaphore, #tpu.memory_space<semaphore_mem>> -> memref<!tpu.dma_semaphore, #tpu.memory_space<semaphore_mem>>
    tpu.wait_dma2 semaphore(%344 : memref<!tpu.dma_semaphore, #tpu.memory_space<semaphore_mem>>) src(%341 : memref<1x128xf32, #tpu.memory_space<any>>) dst(%342 : memref<1x128xf32, #tpu.memory_space<vmem>>)
    %c22_i32_248 = arith.constant 22 : i32
    %c0_i32_249 = arith.constant 0 : i32
    %345 = tpu.memref_slice %arg2[%180, %c0_i32_249] : memref<64x128xf32, #tpu.memory_space<any>> -> memref<1x128xf32, #tpu.memory_space<any>>
    %c22_i32_250 = arith.constant 22 : i32
    %c0_i32_251 = arith.constant 0 : i32
    %346 = tpu.memref_slice %arg4[%c22_i32_250, %c0_i32_251] : memref<32x128xf32, #tpu.memory_space<vmem>> -> memref<1x128xf32, #tpu.memory_space<vmem>>
    %347 = tpu.memref_slice %arg5[%c22_i32_248] : memref<32x!tpu.dma_semaphore, #tpu.memory_space<semaphore_mem>> -> memref<1x!tpu.dma_semaphore, #tpu.memory_space<semaphore_mem>>
    %348 = tpu.memref_squeeze %347 : memref<1x!tpu.dma_semaphore, #tpu.memory_space<semaphore_mem>> -> memref<!tpu.dma_semaphore, #tpu.memory_space<semaphore_mem>>
    tpu.wait_dma2 semaphore(%348 : memref<!tpu.dma_semaphore, #tpu.memory_space<semaphore_mem>>) src(%345 : memref<1x128xf32, #tpu.memory_space<any>>) dst(%346 : memref<1x128xf32, #tpu.memory_space<vmem>>)
    %c23_i32_252 = arith.constant 23 : i32
    %c0_i32_253 = arith.constant 0 : i32
    %349 = tpu.memref_slice %arg2[%188, %c0_i32_253] : memref<64x128xf32, #tpu.memory_space<any>> -> memref<1x128xf32, #tpu.memory_space<any>>
    %c23_i32_254 = arith.constant 23 : i32
    %c0_i32_255 = arith.constant 0 : i32
    %350 = tpu.memref_slice %arg4[%c23_i32_254, %c0_i32_255] : memref<32x128xf32, #tpu.memory_space<vmem>> -> memref<1x128xf32, #tpu.memory_space<vmem>>
    %351 = tpu.memref_slice %arg5[%c23_i32_252] : memref<32x!tpu.dma_semaphore, #tpu.memory_space<semaphore_mem>> -> memref<1x!tpu.dma_semaphore, #tpu.memory_space<semaphore_mem>>
    %352 = tpu.memref_squeeze %351 : memref<1x!tpu.dma_semaphore, #tpu.memory_space<semaphore_mem>> -> memref<!tpu.dma_semaphore, #tpu.memory_space<semaphore_mem>>
    tpu.wait_dma2 semaphore(%352 : memref<!tpu.dma_semaphore, #tpu.memory_space<semaphore_mem>>) src(%349 : memref<1x128xf32, #tpu.memory_space<any>>) dst(%350 : memref<1x128xf32, #tpu.memory_space<vmem>>)
    %c24_i32_256 = arith.constant 24 : i32
    %c0_i32_257 = arith.constant 0 : i32
    %353 = tpu.memref_slice %arg2[%196, %c0_i32_257] : memref<64x128xf32, #tpu.memory_space<any>> -> memref<1x128xf32, #tpu.memory_space<any>>
    %c24_i32_258 = arith.constant 24 : i32
    %c0_i32_259 = arith.constant 0 : i32
    %354 = tpu.memref_slice %arg4[%c24_i32_258, %c0_i32_259] : memref<32x128xf32, #tpu.memory_space<vmem>> -> memref<1x128xf32, #tpu.memory_space<vmem>>
    %355 = tpu.memref_slice %arg5[%c24_i32_256] : memref<32x!tpu.dma_semaphore, #tpu.memory_space<semaphore_mem>> -> memref<1x!tpu.dma_semaphore, #tpu.memory_space<semaphore_mem>>
    %356 = tpu.memref_squeeze %355 : memref<1x!tpu.dma_semaphore, #tpu.memory_space<semaphore_mem>> -> memref<!tpu.dma_semaphore, #tpu.memory_space<semaphore_mem>>
    tpu.wait_dma2 semaphore(%356 : memref<!tpu.dma_semaphore, #tpu.memory_space<semaphore_mem>>) src(%353 : memref<1x128xf32, #tpu.memory_space<any>>) dst(%354 : memref<1x128xf32, #tpu.memory_space<vmem>>)
    %c25_i32_260 = arith.constant 25 : i32
    %c0_i32_261 = arith.constant 0 : i32
    %357 = tpu.memref_slice %arg2[%204, %c0_i32_261] : memref<64x128xf32, #tpu.memory_space<any>> -> memref<1x128xf32, #tpu.memory_space<any>>
    %c25_i32_262 = arith.constant 25 : i32
    %c0_i32_263 = arith.constant 0 : i32
    %358 = tpu.memref_slice %arg4[%c25_i32_262, %c0_i32_263] : memref<32x128xf32, #tpu.memory_space<vmem>> -> memref<1x128xf32, #tpu.memory_space<vmem>>
    %359 = tpu.memref_slice %arg5[%c25_i32_260] : memref<32x!tpu.dma_semaphore, #tpu.memory_space<semaphore_mem>> -> memref<1x!tpu.dma_semaphore, #tpu.memory_space<semaphore_mem>>
    %360 = tpu.memref_squeeze %359 : memref<1x!tpu.dma_semaphore, #tpu.memory_space<semaphore_mem>> -> memref<!tpu.dma_semaphore, #tpu.memory_space<semaphore_mem>>
    tpu.wait_dma2 semaphore(%360 : memref<!tpu.dma_semaphore, #tpu.memory_space<semaphore_mem>>) src(%357 : memref<1x128xf32, #tpu.memory_space<any>>) dst(%358 : memref<1x128xf32, #tpu.memory_space<vmem>>)
    %c26_i32_264 = arith.constant 26 : i32
    %c0_i32_265 = arith.constant 0 : i32
    %361 = tpu.memref_slice %arg2[%212, %c0_i32_265] : memref<64x128xf32, #tpu.memory_space<any>> -> memref<1x128xf32, #tpu.memory_space<any>>
    %c26_i32_266 = arith.constant 26 : i32
    %c0_i32_267 = arith.constant 0 : i32
    %362 = tpu.memref_slice %arg4[%c26_i32_266, %c0_i32_267] : memref<32x128xf32, #tpu.memory_space<vmem>> -> memref<1x128xf32, #tpu.memory_space<vmem>>
    %363 = tpu.memref_slice %arg5[%c26_i32_264] : memref<32x!tpu.dma_semaphore, #tpu.memory_space<semaphore_mem>> -> memref<1x!tpu.dma_semaphore, #tpu.memory_space<semaphore_mem>>
    %364 = tpu.memref_squeeze %363 : memref<1x!tpu.dma_semaphore, #tpu.memory_space<semaphore_mem>> -> memref<!tpu.dma_semaphore, #tpu.memory_space<semaphore_mem>>
    tpu.wait_dma2 semaphore(%364 : memref<!tpu.dma_semaphore, #tpu.memory_space<semaphore_mem>>) src(%361 : memref<1x128xf32, #tpu.memory_space<any>>) dst(%362 : memref<1x128xf32, #tpu.memory_space<vmem>>)
    %c27_i32_268 = arith.constant 27 : i32
    %c0_i32_269 = arith.constant 0 : i32
    %365 = tpu.memref_slice %arg2[%220, %c0_i32_269] : memref<64x128xf32, #tpu.memory_space<any>> -> memref<1x128xf32, #tpu.memory_space<any>>
    %c27_i32_270 = arith.constant 27 : i32
    %c0_i32_271 = arith.constant 0 : i32
    %366 = tpu.memref_slice %arg4[%c27_i32_270, %c0_i32_271] : memref<32x128xf32, #tpu.memory_space<vmem>> -> memref<1x128xf32, #tpu.memory_space<vmem>>
    %367 = tpu.memref_slice %arg5[%c27_i32_268] : memref<32x!tpu.dma_semaphore, #tpu.memory_space<semaphore_mem>> -> memref<1x!tpu.dma_semaphore, #tpu.memory_space<semaphore_mem>>
    %368 = tpu.memref_squeeze %367 : memref<1x!tpu.dma_semaphore, #tpu.memory_space<semaphore_mem>> -> memref<!tpu.dma_semaphore, #tpu.memory_space<semaphore_mem>>
    tpu.wait_dma2 semaphore(%368 : memref<!tpu.dma_semaphore, #tpu.memory_space<semaphore_mem>>) src(%365 : memref<1x128xf32, #tpu.memory_space<any>>) dst(%366 : memref<1x128xf32, #tpu.memory_space<vmem>>)
    %c28_i32_272 = arith.constant 28 : i32
    %c0_i32_273 = arith.constant 0 : i32
    %369 = tpu.memref_slice %arg2[%228, %c0_i32_273] : memref<64x128xf32, #tpu.memory_space<any>> -> memref<1x128xf32, #tpu.memory_space<any>>
    %c28_i32_274 = arith.constant 28 : i32
    %c0_i32_275 = arith.constant 0 : i32
    %370 = tpu.memref_slice %arg4[%c28_i32_274, %c0_i32_275] : memref<32x128xf32, #tpu.memory_space<vmem>> -> memref<1x128xf32, #tpu.memory_space<vmem>>
    %371 = tpu.memref_slice %arg5[%c28_i32_272] : memref<32x!tpu.dma_semaphore, #tpu.memory_space<semaphore_mem>> -> memref<1x!tpu.dma_semaphore, #tpu.memory_space<semaphore_mem>>
    %372 = tpu.memref_squeeze %371 : memref<1x!tpu.dma_semaphore, #tpu.memory_space<semaphore_mem>> -> memref<!tpu.dma_semaphore, #tpu.memory_space<semaphore_mem>>
    tpu.wait_dma2 semaphore(%372 : memref<!tpu.dma_semaphore, #tpu.memory_space<semaphore_mem>>) src(%369 : memref<1x128xf32, #tpu.memory_space<any>>) dst(%370 : memref<1x128xf32, #tpu.memory_space<vmem>>)
    %c29_i32_276 = arith.constant 29 : i32
    %c0_i32_277 = arith.constant 0 : i32
    %373 = tpu.memref_slice %arg2[%236, %c0_i32_277] : memref<64x128xf32, #tpu.memory_space<any>> -> memref<1x128xf32, #tpu.memory_space<any>>
    %c29_i32_278 = arith.constant 29 : i32
    %c0_i32_279 = arith.constant 0 : i32
    %374 = tpu.memref_slice %arg4[%c29_i32_278, %c0_i32_279] : memref<32x128xf32, #tpu.memory_space<vmem>> -> memref<1x128xf32, #tpu.memory_space<vmem>>
    %375 = tpu.memref_slice %arg5[%c29_i32_276] : memref<32x!tpu.dma_semaphore, #tpu.memory_space<semaphore_mem>> -> memref<1x!tpu.dma_semaphore, #tpu.memory_space<semaphore_mem>>
    %376 = tpu.memref_squeeze %375 : memref<1x!tpu.dma_semaphore, #tpu.memory_space<semaphore_mem>> -> memref<!tpu.dma_semaphore, #tpu.memory_space<semaphore_mem>>
    tpu.wait_dma2 semaphore(%376 : memref<!tpu.dma_semaphore, #tpu.memory_space<semaphore_mem>>) src(%373 : memref<1x128xf32, #tpu.memory_space<any>>) dst(%374 : memref<1x128xf32, #tpu.memory_space<vmem>>)
    %c30_i32_280 = arith.constant 30 : i32
    %c0_i32_281 = arith.constant 0 : i32
    %377 = tpu.memref_slice %arg2[%244, %c0_i32_281] : memref<64x128xf32, #tpu.memory_space<any>> -> memref<1x128xf32, #tpu.memory_space<any>>
    %c30_i32_282 = arith.constant 30 : i32
    %c0_i32_283 = arith.constant 0 : i32
    %378 = tpu.memref_slice %arg4[%c30_i32_282, %c0_i32_283] : memref<32x128xf32, #tpu.memory_space<vmem>> -> memref<1x128xf32, #tpu.memory_space<vmem>>
    %379 = tpu.memref_slice %arg5[%c30_i32_280] : memref<32x!tpu.dma_semaphore, #tpu.memory_space<semaphore_mem>> -> memref<1x!tpu.dma_semaphore, #tpu.memory_space<semaphore_mem>>
    %380 = tpu.memref_squeeze %379 : memref<1x!tpu.dma_semaphore, #tpu.memory_space<semaphore_mem>> -> memref<!tpu.dma_semaphore, #tpu.memory_space<semaphore_mem>>
    tpu.wait_dma2 semaphore(%380 : memref<!tpu.dma_semaphore, #tpu.memory_space<semaphore_mem>>) src(%377 : memref<1x128xf32, #tpu.memory_space<any>>) dst(%378 : memref<1x128xf32, #tpu.memory_space<vmem>>)
    %c31_i32_284 = arith.constant 31 : i32
    %c0_i32_285 = arith.constant 0 : i32
    %381 = tpu.memref_slice %arg2[%252, %c0_i32_285] : memref<64x128xf32, #tpu.memory_space<any>> -> memref<1x128xf32, #tpu.memory_space<any>>
    %c31_i32_286 = arith.constant 31 : i32
    %c0_i32_287 = arith.constant 0 : i32
    %382 = tpu.memref_slice %arg4[%c31_i32_286, %c0_i32_287] : memref<32x128xf32, #tpu.memory_space<vmem>> -> memref<1x128xf32, #tpu.memory_space<vmem>>
    %383 = tpu.memref_slice %arg5[%c31_i32_284] : memref<32x!tpu.dma_semaphore, #tpu.memory_space<semaphore_mem>> -> memref<1x!tpu.dma_semaphore, #tpu.memory_space<semaphore_mem>>
    %384 = tpu.memref_squeeze %383 : memref<1x!tpu.dma_semaphore, #tpu.memory_space<semaphore_mem>> -> memref<!tpu.dma_semaphore, #tpu.memory_space<semaphore_mem>>
    tpu.wait_dma2 semaphore(%384 : memref<!tpu.dma_semaphore, #tpu.memory_space<semaphore_mem>>) src(%381 : memref<1x128xf32, #tpu.memory_space<any>>) dst(%382 : memref<1x128xf32, #tpu.memory_space<vmem>>)
    %c0 = arith.constant 0 : index
    %c0_288 = arith.constant 0 : index
    %385 = vector.load %arg4[%c0, %c0_288] : memref<32x128xf32, #tpu.memory_space<vmem>>, vector<8x128xf32>
    %c8 = arith.constant 8 : index
    %c0_289 = arith.constant 0 : index
    %386 = vector.load %arg4[%c8, %c0_289] : memref<32x128xf32, #tpu.memory_space<vmem>>, vector<8x128xf32>
    %387 = arith.addf %385, %386 : vector<8x128xf32>
    %c16 = arith.constant 16 : index
    %c0_290 = arith.constant 0 : index
    %388 = vector.load %arg4[%c16, %c0_290] : memref<32x128xf32, #tpu.memory_space<vmem>>, vector<8x128xf32>
    %389 = arith.addf %387, %388 : vector<8x128xf32>
    %c24 = arith.constant 24 : index
    %c0_291 = arith.constant 0 : index
    %390 = vector.load %arg4[%c24, %c0_291] : memref<32x128xf32, #tpu.memory_space<vmem>>, vector<8x128xf32>
    %391 = arith.addf %389, %390 : vector<8x128xf32>
    %cst = arith.constant 2.500000e-01 : f32
    %392 = vector.broadcast %cst : f32 to vector<8x128xf32>
    %393 = arith.mulf %391, %392 : vector<8x128xf32>
    %c0_292 = arith.constant 0 : index
    %c0_293 = arith.constant 0 : index
    %394 = vector.load %arg3[%c0_292, %c0_293] : memref<8x128xf32, #tpu.memory_space<vmem>>, vector<8x128xf32>
    tpu.vector_store %arg3[%c0_292, %c0_293], %393 {strides = array<i32>} : memref<8x128xf32, #tpu.memory_space<vmem>>, vector<8x128xf32>,
    return
  }
  func.func @transform_1(%arg0: i32, %arg1: memref<32xi32, #tpu.memory_space<smem>>) -> (i32, i32) {
    %c0_i32 = arith.constant 0 : i32
    %c0_i32_0 = arith.constant 0 : i32
    return %arg0, %c0_i32 : i32, i32
  }
}

</mosaic_0001>

<llo_original>
// kernel: tpu_custom_call.1
$region0: #{tpu_custom_call.1}
  #allocation0 [shape = 'u32[]', space=smem, size = 0x4, offset = 0x4, fixed_abs, tag = 'smem constant byte address 0x4 - core index']
  #allocation1 [shape = 'u32[144,128]{1,0:T(1,128)}', space=vmem, size = 0x12000, scoped, tag = 'internal scratch']
  #allocation2 [shape = 'f32[32,128]{1,0:T(8,128)}', space=vmem, size = 0x4000, scoped, tag = 'scratch operand']
  #allocation3 [shape = 's32[32]{0}', space=sflag, size = 0x80, scoped, tag = 'scratch operand']
  #allocation4 [shape = 's32[1]{0}', space=sflag, size = 0x4, scoped, tag = 'scoped memory for tpu_custom_call.1']
  #allocation5 [shape = 'u8[512]{0}', space=smem, size = 0x200, scoped, tag = 'prefetched SMEM operand 0']
  #allocation8 [shape = 's32[]', space=sflag, size = 0x4, offset = 0, fixed_abs, tag = 'sflag constant byte address 0x0 - dummy sync flag']
  #allocation9 [shape = 's32[]', space=sflag, size = 0x4, offset = 0, fixed_abs, tag = 'sflag constant byte address 0x0 - dummy sync flag']
  #allocation10 [shape = 'u32[]', space=smem, size = 0x4, offset = 0x44, fixed_abs, tag = 'smem constant byte address 0x44 - assertion arg 0']
  #allocation11 [shape = 'u32[]', space=smem, size = 0x4, offset = 0x48, fixed_abs, tag = 'smem constant byte address 0x48 - assertion arg 1']
  #allocation12 [shape = 's32[]', space=sflag, size = 0x4, offset = 0, fixed_abs, tag = 'sflag constant byte address 0x0 - dummy sync flag']
  #allocation13 [shape = 's32[]', space=sflag, size = 0x4, offset = 0, fixed_abs, tag = 'sflag constant byte address 0x0 - dummy sync flag']
  #allocation14 [shape = 's32[]', space=sflag, size = 0x4, offset = 0, fixed_abs, tag = 'sflag constant byte address 0x0 - dummy sync flag']
  #allocation15 [shape = 's32[]', space=sflag, size = 0x4, offset = 0, fixed_abs, tag = 'sflag constant byte address 0x0 - dummy sync flag']
  #allocation16 [shape = 's32[]', space=sflag, size = 0x4, offset = 0, fixed_abs, tag = 'sflag constant byte address 0x0 - dummy sync flag']
  #allocation17 [shape = 's32[]', space=sflag, size = 0x4, offset = 0, fixed_abs, tag = 'sflag constant byte address 0x0 - dummy sync flag']
  #allocation18 [shape = 's32[]', space=sflag, size = 0x4, offset = 0, fixed_abs, tag = 'sflag constant byte address 0x0 - dummy sync flag']
  #allocation19 [shape = 's32[]', space=sflag, size = 0x4, offset = 0, fixed_abs, tag = 'sflag constant byte address 0x0 - dummy sync flag']
  #allocation20 [shape = 's32[]', space=sflag, size = 0x4, offset = 0, fixed_abs, tag = 'sflag constant byte address 0x0 - dummy sync flag']
  #allocation21 [shape = 's32[]', space=sflag, size = 0x4, offset = 0, fixed_abs, tag = 'sflag constant byte address 0x0 - dummy sync flag']
  #allocation22 [shape = 's32[]', space=sflag, size = 0x4, offset = 0, fixed_abs, tag = 'sflag constant byte address 0x0 - dummy sync flag']
  #allocation23 [shape = 's32[]', space=sflag, size = 0x4, offset = 0, fixed_abs, tag = 'sflag constant byte address 0x0 - dummy sync flag']
  #allocation24 [shape = 's32[]', space=sflag, size = 0x4, offset = 0, fixed_abs, tag = 'sflag constant byte address 0x0 - dummy sync flag']
  #allocation25 [shape = 's32[]', space=sflag, size = 0x4, offset = 0, fixed_abs, tag = 'sflag constant byte address 0x0 - dummy sync flag']
  #allocation26 [shape = 's32[]', space=sflag, size = 0x4, offset = 0, fixed_abs, tag = 'sflag constant byte address 0x0 - dummy sync flag']
  #allocation27 [shape = 's32[]', space=sflag, size = 0x4, offset = 0, fixed_abs, tag = 'sflag constant byte address 0x0 - dummy sync flag']
  #allocation28 [shape = 's32[]', space=sflag, size = 0x4, offset = 0, fixed_abs, tag = 'sflag constant byte address 0x0 - dummy sync flag']
  #allocation29 [shape = 's32[]', space=sflag, size = 0x4, offset = 0, fixed_abs, tag = 'sflag constant byte address 0x0 - dummy sync flag']
  #allocation30 [shape = 's32[]', space=sflag, size = 0x4, offset = 0, fixed_abs, tag = 'sflag constant byte address 0x0 - dummy sync flag']
  #allocation31 [shape = 's32[]', space=sflag, size = 0x4, offset = 0, fixed_abs, tag = 'sflag constant byte address 0x0 - dummy sync flag']
  #allocation32 [shape = 's32[]', space=sflag, size = 0x4, offset = 0, fixed_abs, tag = 'sflag constant byte address 0x0 - dummy sync flag']
  #allocation33 [shape = 's32[]', space=sflag, size = 0x4, offset = 0, fixed_abs, tag = 'sflag constant byte address 0x0 - dummy sync flag']
  #allocation34 [shape = 's32[]', space=sflag, size = 0x4, offset = 0, fixed_abs, tag = 'sflag constant byte address 0x0 - dummy sync flag']
  #allocation35 [shape = 's32[]', space=sflag, size = 0x4, offset = 0, fixed_abs, tag = 'sflag constant byte address 0x0 - dummy sync flag']
  #allocation36 [shape = 's32[]', space=sflag, size = 0x4, offset = 0, fixed_abs, tag = 'sflag constant byte address 0x0 - dummy sync flag']
  #allocation37 [shape = 's32[]', space=sflag, size = 0x4, offset = 0, fixed_abs, tag = 'sflag constant byte address 0x0 - dummy sync flag']
  #allocation38 [shape = 's32[]', space=sflag, size = 0x4, offset = 0, fixed_abs, tag = 'sflag constant byte address 0x0 - dummy sync flag']
  #allocation39 [shape = 's32[]', space=sflag, size = 0x4, offset = 0, fixed_abs, tag = 'sflag constant byte address 0x0 - dummy sync flag']
  #allocation40 [shape = 's32[]', space=sflag, size = 0x4, offset = 0, fixed_abs, tag = 'sflag constant byte address 0x0 - dummy sync flag']
  #allocation41 [shape = 's32[]', space=sflag, size = 0x4, offset = 0, fixed_abs, tag = 'sflag constant byte address 0x0 - dummy sync flag']
  #allocation42 [shape = 's32[]', space=sflag, size = 0x4, offset = 0, fixed_abs, tag = 'sflag constant byte address 0x0 - dummy sync flag']
  #allocation43 [shape = 's32[]', space=sflag, size = 0x4, offset = 0, fixed_abs, tag = 'sflag constant byte address 0x0 - dummy sync flag']
  #allocation44 [shape = 's32[]', space=sflag, size = 0x4, offset = 0, fixed_abs, tag = 'sflag constant byte address 0x0 - dummy sync flag']
  #allocation45 [shape = 's32[]', space=sflag, size = 0x4, offset = 0, fixed_abs, tag = 'sflag constant byte address 0x0 - dummy sync flag']
  #allocation46 [shape = 's32[]', space=sflag, size = 0x4, offset = 0, fixed_abs, tag = 'sflag constant byte address 0x0 - dummy sync flag']
  #allocation47 [shape = 's32[]', space=sflag, size = 0x4, offset = 0, fixed_abs, tag = 'sflag constant byte address 0x0 - dummy sync flag']
  #allocation48 [shape = 's32[]', space=sflag, size = 0x4, offset = 0, fixed_abs, tag = 'sflag constant byte address 0x0 - dummy sync flag']
  #allocation49 [shape = 's32[]', space=sflag, size = 0x4, offset = 0, fixed_abs, tag = 'sflag constant byte address 0x0 - dummy sync flag']
  #allocation50 [shape = 's32[]', space=sflag, size = 0x4, offset = 0, fixed_abs, tag = 'sflag constant byte address 0x0 - dummy sync flag']
  #allocation51 [shape = 's32[]', space=sflag, size = 0x4, offset = 0, fixed_abs, tag = 'sflag constant byte address 0x0 - dummy sync flag']
  #allocation52 [shape = 's32[]', space=sflag, size = 0x4, offset = 0, fixed_abs, tag = 'sflag constant byte address 0x0 - dummy sync flag']
  #allocation53 [shape = 's32[]', space=sflag, size = 0x4, offset = 0, fixed_abs, tag = 'sflag constant byte address 0x0 - dummy sync flag']
  #allocation54 [shape = 's32[]', space=sflag, size = 0x4, offset = 0, fixed_abs, tag = 'sflag constant byte address 0x0 - dummy sync flag']
  #allocation55 [shape = 's32[]', space=sflag, size = 0x4, offset = 0, fixed_abs, tag = 'sflag constant byte address 0x0 - dummy sync flag']
  #allocation56 [shape = 's32[]', space=sflag, size = 0x4, offset = 0, fixed_abs, tag = 'sflag constant byte address 0x0 - dummy sync flag']
  #allocation57 [shape = 's32[]', space=sflag, size = 0x4, offset = 0, fixed_abs, tag = 'sflag constant byte address 0x0 - dummy sync flag']
  #allocation58 [shape = 's32[]', space=sflag, size = 0x4, offset = 0, fixed_abs, tag = 'sflag constant byte address 0x0 - dummy sync flag']
  #allocation59 [shape = 's32[]', space=sflag, size = 0x4, offset = 0, fixed_abs, tag = 'sflag constant byte address 0x0 - dummy sync flag']
  #allocation60 [shape = 's32[]', space=sflag, size = 0x4, offset = 0, fixed_abs, tag = 'sflag constant byte address 0x0 - dummy sync flag']
  #allocation61 [shape = 's32[]', space=sflag, size = 0x4, offset = 0, fixed_abs, tag = 'sflag constant byte address 0x0 - dummy sync flag']
  #allocation62 [shape = 's32[]', space=sflag, size = 0x4, offset = 0, fixed_abs, tag = 'sflag constant byte address 0x0 - dummy sync flag']
  #allocation63 [shape = 's32[]', space=sflag, size = 0x4, offset = 0, fixed_abs, tag = 'sflag constant byte address 0x0 - dummy sync flag']
  #allocation64 [shape = 's32[]', space=sflag, size = 0x4, offset = 0, fixed_abs, tag = 'sflag constant byte address 0x0 - dummy sync flag']
  #allocation65 [shape = 's32[]', space=sflag, size = 0x4, offset = 0, fixed_abs, tag = 'sflag constant byte address 0x0 - dummy sync flag']
  #allocation66 [shape = 's32[]', space=sflag, size = 0x4, offset = 0, fixed_abs, tag = 'sflag constant byte address 0x0 - dummy sync flag']
  #allocation67 [shape = 's32[]', space=sflag, size = 0x4, offset = 0, fixed_abs, tag = 'sflag constant byte address 0x0 - dummy sync flag']
  #allocation68 [shape = 's32[]', space=sflag, size = 0x4, offset = 0, fixed_abs, tag = 'sflag constant byte address 0x0 - dummy sync flag']
  #allocation69 [shape = 's32[]', space=sflag, size = 0x4, offset = 0, fixed_abs, tag = 'sflag constant byte address 0x0 - dummy sync flag']
  #allocation70 [shape = 's32[]', space=sflag, size = 0x4, offset = 0, fixed_abs, tag = 'sflag constant byte address 0x0 - dummy sync flag']
  #allocation71 [shape = 's32[]', space=sflag, size = 0x4, offset = 0, fixed_abs, tag = 'sflag constant byte address 0x0 - dummy sync flag']
  #allocation72 [shape = 's32[]', space=sflag, size = 0x4, offset = 0, fixed_abs, tag = 'sflag constant byte address 0x0 - dummy sync flag']
  #allocation73 [shape = 's32[]', space=sflag, size = 0x4, offset = 0, fixed_abs, tag = 'sflag constant byte address 0x0 - dummy sync flag']
  %s0 = inlined_call_operand.hbm [shape: s32[32], index: 0, kind: input, shape index: {}]
  %s1 = inlined_call_operand.hbm [shape: f32[64,128], index: 1, kind: input, shape index: {}]
  %s2 = inlined_call_operand.hbm [shape: f32[8,128], index: 2, kind: output, shape index: {}]
  %s3 = sld [smem:[#allocation0]]
  $region138: #{tpu_custom_call.1} parent=0
    _
  %s5 = ssub.s32 1, %s3
  %s6 = scalar_select 0, %s5, %s3
  %8 = dma.hbm_to_smem %s0, 16, [#allocation5], [#allocation4]
  %9 = dma.done [#allocation4], 16
  %10 = sfence
  $region1: #{tpu_custom_call.1} parent=0
    #allocation6 [shape = 'u8[4096]{0}', space=vmem, size = 0x1000, scoped, tag = 'output window, operand 0, single buffered']
    #allocation7 [shape = 's32[1]{0}', space=sflag, size = 0x4, scoped, tag = 'scoped memory for tpu_custom_call.1']
    %11 = vsyncpa [#allocation7], 0
    %s12 = smul.u32 0, 32
    %s13 = sld [smem:[#allocation5 + %s12]]
    %s14 = smul.addr %s13, 16
    %s15 = scalar_lea.hbm %s1, %s14
    // Predicated region
    $region2: #{tpu_custom_call.1} parent=1 // pred_check
      _
    $region3: #{tpu_custom_call.1} parent=1 // pred_check_branch
      %17 = sbr.rel target = $region5
    $region4: #{tpu_custom_call.1} parent=1 // pred_region
      %18 = sst [smem:[#allocation10]] [#allocation9]
      %19 = sst [smem:[#allocation11]] [#allocation8]
    $region5: #{tpu_custom_call.1} parent=1 // pred_fallthru
      _
    %21 = shalt.err (0)
    %s23 = sshll.u32 [#allocation2], 4
    %s24 = int_to_ptr.vmem [resolvable:$true] %s23
    %26 = dma.hbm_to_vmem [thread:$0]  %s15, 16, %s24, [#allocation3]
    %s27 = sadd.s32 %s12, 4
    %s28 = sld [smem:[#allocation5 + %s27]]
    %s29 = smul.addr %s28, 16
    %s30 = scalar_lea.hbm %s1, %s29
    %s31 = scalar_lea.vmem [#allocation2], 1
    %s32 = scalar_lea.sflag [#allocation3], 1
    // Predicated region
    $region6: #{tpu_custom_call.1} parent=1 // pred_check
      _
    $region7: #{tpu_custom_call.1} parent=1 // pred_check_branch
      %34 = sbr.rel target = $region9
    $region8: #{tpu_custom_call.1} parent=1 // pred_region
      %35 = sst [smem:[#allocation10]] [#allocation13]
      %36 = sst [smem:[#allocation11]] [#allocation12]
    $region9: #{tpu_custom_call.1} parent=1 // pred_fallthru
      _
    %38 = shalt.err (0)
    %s40 = sshll.u32 %s31, 4
    %s41 = int_to_ptr.vmem [resolvable:$true] %s40
    %43 = dma.hbm_to_vmem [thread:$0]  %s30, 16, %s41, %s32
    %s44 = sadd.s32 %s12, 8
    %s45 = sld [smem:[#allocation5 + %s44]]
    %s46 = smul.addr %s45, 16
    %s47 = scalar_lea.hbm %s1, %s46
    %s48 = scalar_lea.vmem [#allocation2], 2
    %s49 = scalar_lea.sflag [#allocation3], 2
    // Predicated region
    $region10: #{tpu_custom_call.1} parent=1 // pred_check
      _
    $region11: #{tpu_custom_call.1} parent=1 // pred_check_branch
      %51 = sbr.rel target = $region13
    $region12: #{tpu_custom_call.1} parent=1 // pred_region
      %52 = sst [smem:[#allocation10]] [#allocation15]
      %53 = sst [smem:[#allocation11]] [#allocation14]
    $region13: #{tpu_custom_call.1} parent=1 // pred_fallthru
      _
    %55 = shalt.err (0)
    %s57 = sshll.u32 %s48, 4
    %s58 = int_to_ptr.vmem [resolvable:$true] %s57
    %60 = dma.hbm_to_vmem [thread:$0]  %s47, 16, %s58, %s49
    %s61 = sadd.s32 %s12, 12
    %s62 = sld [smem:[#allocation5 + %s61]]
    %s63 = smul.addr %s62, 16
    %s64 = scalar_lea.hbm %s1, %s63
    %s65 = scalar_lea.vmem [#allocation2], 3
    %s66 = scalar_lea.sflag [#allocation3], 3
    // Predicated region
    $region14: #{tpu_custom_call.1} parent=1 // pred_check
      _
    $region15: #{tpu_custom_call.1} parent=1 // pred_check_branch
      %68 = sbr.rel target = $region17
    $region16: #{tpu_custom_call.1} parent=1 // pred_region
      %69 = sst [smem:[#allocation10]] [#allocation17]
      %70 = sst [smem:[#allocation11]] [#allocation16]
    $region17: #{tpu_custom_call.1} parent=1 // pred_fallthru
      _
    %72 = shalt.err (0)
    %s74 = sshll.u32 %s65, 4
    %s75 = int_to_ptr.vmem [resolvable:$true] %s74
    %77 = dma.hbm_to_vmem [thread:$0]  %s64, 16, %s75, %s66
    %s78 = sadd.s32 %s12, 16
    %s79 = sld [smem:[#allocation5 + %s78]]
    %s80 = smul.addr %s79, 16
    %s81 = scalar_lea.hbm %s1, %s80
    %s82 = scalar_lea.vmem [#allocation2], 4
    %s83 = scalar_lea.sflag [#allocation3], 4
    // Predicated region
    $region18: #{tpu_custom_call.1} parent=1 // pred_check
      _
    $region19: #{tpu_custom_call.1} parent=1 // pred_check_branch
      %85 = sbr.rel target = $region21
    $region20: #{tpu_custom_call.1} parent=1 // pred_region
      %86 = sst [smem:[#allocation10]] [#allocation19]
      %87 = sst [smem:[#allocation11]] [#allocation18]
    $region21: #{tpu_custom_call.1} parent=1 // pred_fallthru
      _
    %89 = shalt.err (0)
    %s91 = sshll.u32 %s82, 4
    %s92 = int_to_ptr.vmem [resolvable:$true] %s91
    %94 = dma.hbm_to_vmem [thread:$0]  %s81, 16, %s92, %s83
    %s95 = sadd.s32 %s12, 20
    %s96 = sld [smem:[#allocation5 + %s95]]
    %s97 = smul.addr %s96, 16
    %s98 = scalar_lea.hbm %s1, %s97
    %s99 = scalar_lea.vmem [#allocation2], 5
    %s100 = scalar_lea.sflag [#allocation3], 5
    // Predicated region
    $region22: #{tpu_custom_call.1} parent=1 // pred_check
      _
    $region23: #{tpu_custom_call.1} parent=1 // pred_check_branch
      %102 = sbr.rel target = $region25
    $region24: #{tpu_custom_call.1} parent=1 // pred_region
      %103 = sst [smem:[#allocation10]] [#allocation21]
      %104 = sst [smem:[#allocation11]] [#allocation20]
    $region25: #{tpu_custom_call.1} parent=1 // pred_fallthru
      _
    %106 = shalt.err (0)
    %s108 = sshll.u32 %s99, 4
    %s109 = int_to_ptr.vmem [resolvable:$true] %s108
    %111 = dma.hbm_to_vmem [thread:$0]  %s98, 16, %s109, %s100
    %s112 = sadd.s32 %s12, 24
    %s113 = sld [smem:[#allocation5 + %s112]]
    %s114 = smul.addr %s113, 16
    %s115 = scalar_lea.hbm %s1, %s114
    %s116 = scalar_lea.vmem [#allocation2], 6
    %s117 = scalar_lea.sflag [#allocation3], 6
    // Predicated region
    $region26: #{tpu_custom_call.1} parent=1 // pred_check
      _
    $region27: #{tpu_custom_call.1} parent=1 // pred_check_branch
      %119 = sbr.rel target = $region29
    $region28: #{tpu_custom_call.1} parent=1 // pred_region
      %120 = sst [smem:[#allocation10]] [#allocation23]
      %121 = sst [smem:[#allocation11]] [#allocation22]
    $region29: #{tpu_custom_call.1} parent=1 // pred_fallthru
      _
    %123 = shalt.err (0)
    %s125 = sshll.u32 %s116, 4
    %s126 = int_to_ptr.vmem [resolvable:$true] %s125
    %128 = dma.hbm_to_vmem [thread:$0]  %s115, 16, %s126, %s117
    %s129 = sadd.s32 %s12, 28
    %s130 = sld [smem:[#allocation5 + %s129]]
    %s131 = smul.addr %s130, 16
    %s132 = scalar_lea.hbm %s1, %s131
    %s133 = scalar_lea.vmem [#allocation2], 7
    %s134 = scalar_lea.sflag [#allocation3], 7
    // Predicated region
    $region30: #{tpu_custom_call.1} parent=1 // pred_check
      _
    $region31: #{tpu_custom_call.1} parent=1 // pred_check_branch
      %136 = sbr.rel target = $region33
    $region32: #{tpu_custom_call.1} parent=1 // pred_region
      %137 = sst [smem:[#allocation10]] [#allocation25]
      %138 = sst [smem:[#allocation11]] [#allocation24]
    $region33: #{tpu_custom_call.1} parent=1 // pred_fallthru
      _
    %140 = shalt.err (0)
    %s142 = sshll.u32 %s133, 4
    %s143 = int_to_ptr.vmem [resolvable:$true] %s142
    %145 = dma.hbm_to_vmem [thread:$0]  %s132, 16, %s143, %s134
    %s146 = sadd.s32 %s12, 1
    %s147 = sld [smem:[#allocation5 + %s146]]
    %s148 = smul.addr %s147, 16
    %s149 = scalar_lea.hbm %s1, %s148
    %s150 = scalar_lea.vmem [#allocation2], 8
    %s151 = scalar_lea.sflag [#allocation3], 8
    // Predicated region
    $region34: #{tpu_custom_call.1} parent=1 // pred_check
      _
    $region35: #{tpu_custom_call.1} parent=1 // pred_check_branch
      %153 = sbr.rel target = $region37
    $region36: #{tpu_custom_call.1} parent=1 // pred_region
      %154 = sst [smem:[#allocation10]] [#allocation27]
      %155 = sst [smem:[#allocation11]] [#allocation26]
    $region37: #{tpu_custom_call.1} parent=1 // pred_fallthru
      _
    %157 = shalt.err (0)
    %s159 = sshll.u32 %s150, 4
    %s160 = int_to_ptr.vmem [resolvable:$true] %s159
    %162 = dma.hbm_to_vmem [thread:$0]  %s149, 16, %s160, %s151
    %s163 = sadd.s32 %s12, 5
    %s164 = sld [smem:[#allocation5 + %s163]]
    %s165 = smul.addr %s164, 16
    %s166 = scalar_lea.hbm %s1, %s165
    %s167 = scalar_lea.vmem [#allocation2], 9
    %s168 = scalar_lea.sflag [#allocation3], 9
    // Predicated region
    $region38: #{tpu_custom_call.1} parent=1 // pred_check
      _
    $region39: #{tpu_custom_call.1} parent=1 // pred_check_branch
      %170 = sbr.rel target = $region41
    $region40: #{tpu_custom_call.1} parent=1 // pred_region
      %171 = sst [smem:[#allocation10]] [#allocation29]
      %172 = sst [smem:[#allocation11]] [#allocation28]
    $region41: #{tpu_custom_call.1} parent=1 // pred_fallthru
      _
    %174 = shalt.err (0)
    %s176 = sshll.u32 %s167, 4
    %s177 = int_to_ptr.vmem [resolvable:$true] %s176
    %179 = dma.hbm_to_vmem [thread:$0]  %s166, 16, %s177, %s168
    %s180 = sadd.s32 %s12, 9
    %s181 = sld [smem:[#allocation5 + %s180]]
    %s182 = smul.addr %s181, 16
    %s183 = scalar_lea.hbm %s1, %s182
    %s184 = scalar_lea.vmem [#allocation2], 10
    %s185 = scalar_lea.sflag [#allocation3], 10
    // Predicated region
    $region42: #{tpu_custom_call.1} parent=1 // pred_check
      _
    $region43: #{tpu_custom_call.1} parent=1 // pred_check_branch
      %187 = sbr.rel target = $region45
    $region44: #{tpu_custom_call.1} parent=1 // pred_region
      %188 = sst [smem:[#allocation10]] [#allocation31]
      %189 = sst [smem:[#allocation11]] [#allocation30]
    $region45: #{tpu_custom_call.1} parent=1 // pred_fallthru
      _
    %191 = shalt.err (0)
    %s193 = sshll.u32 %s184, 4
    %s194 = int_to_ptr.vmem [resolvable:$true] %s193
    %196 = dma.hbm_to_vmem [thread:$0]  %s183, 16, %s194, %s185
    %s197 = sadd.s32 %s12, 13
    %s198 = sld [smem:[#allocation5 + %s197]]
    %s199 = smul.addr %s198, 16
    %s200 = scalar_lea.hbm %s1, %s199
    %s201 = scalar_lea.vmem [#allocation2], 11
    %s202 = scalar_lea.sflag [#allocation3], 11
    // Predicated region
    $region46: #{tpu_custom_call.1} parent=1 // pred_check
      _
    $region47: #{tpu_custom_call.1} parent=1 // pred_check_branch
      %204 = sbr.rel target = $region49
    $region48: #{tpu_custom_call.1} parent=1 // pred_region
      %205 = sst [smem:[#allocation10]] [#allocation33]
      %206 = sst [smem:[#allocation11]] [#allocation32]
    $region49: #{tpu_custom_call.1} parent=1 // pred_fallthru
      _
    %208 = shalt.err (0)
    %s210 = sshll.u32 %s201, 4
    %s211 = int_to_ptr.vmem [resolvable:$true] %s210
    %213 = dma.hbm_to_vmem [thread:$0]  %s200, 16, %s211, %s202
    %s214 = sadd.s32 %s12, 17
    %s215 = sld [smem:[#allocation5 + %s214]]
    %s216 = smul.addr %s215, 16
    %s217 = scalar_lea.hbm %s1, %s216
    %s218 = scalar_lea.vmem [#allocation2], 12
    %s219 = scalar_lea.sflag [#allocation3], 12
    // Predicated region
    $region50: #{tpu_custom_call.1} parent=1 // pred_check
      _
    $region51: #{tpu_custom_call.1} parent=1 // pred_check_branch
      %221 = sbr.rel target = $region53
    $region52: #{tpu_custom_call.1} parent=1 // pred_region
      %222 = sst [smem:[#allocation10]] [#allocation35]
      %223 = sst [smem:[#allocation11]] [#allocation34]
    $region53: #{tpu_custom_call.1} parent=1 // pred_fallthru
      _
    %225 = shalt.err (0)
    %s227 = sshll.u32 %s218, 4
    %s228 = int_to_ptr.vmem [resolvable:$true] %s227
    %230 = dma.hbm_to_vmem [thread:$0]  %s217, 16, %s228, %s219
    %s231 = sadd.s32 %s12, 21
    %s232 = sld [smem:[#allocation5 + %s231]]
    %s233 = smul.addr %s232, 16
    %s234 = scalar_lea.hbm %s1, %s233
    %s235 = scalar_lea.vmem [#allocation2], 13
    %s236 = scalar_lea.sflag [#allocation3], 13
    // Predicated region
    $region54: #{tpu_custom_call.1} parent=1 // pred_check
      _
    $region55: #{tpu_custom_call.1} parent=1 // pred_check_branch
      %238 = sbr.rel target = $region57
    $region56: #{tpu_custom_call.1} parent=1 // pred_region
      %239 = sst [smem:[#allocation10]] [#allocation37]
      %240 = sst [smem:[#allocation11]] [#allocation36]
    $region57: #{tpu_custom_call.1} parent=1 // pred_fallthru
      _
    %242 = shalt.err (0)
    %s244 = sshll.u32 %s235, 4
    %s245 = int_to_ptr.vmem [resolvable:$true] %s244
    %247 = dma.hbm_to_vmem [thread:$0]  %s234, 16, %s245, %s236
    %s248 = sadd.s32 %s12, 25
    %s249 = sld [smem:[#allocation5 + %s248]]
    %s250 = smul.addr %s249, 16
    %s251 = scalar_lea.hbm %s1, %s250
    %s252 = scalar_lea.vmem [#allocation2], 14
    %s253 = scalar_lea.sflag [#allocation3], 14
    // Predicated region
    $region58: #{tpu_custom_call.1} parent=1 // pred_check
      _
    $region59: #{tpu_custom_call.1} parent=1 // pred_check_branch
      %255 = sbr.rel target = $region61
    $region60: #{tpu_custom_call.1} parent=1 // pred_region
      %256 = sst [smem:[#allocation10]] [#allocation39]
      %257 = sst [smem:[#allocation11]] [#allocation38]
    $region61: #{tpu_custom_call.1} parent=1 // pred_fallthru
      _
    %259 = shalt.err (0)
    %s261 = sshll.u32 %s252, 4
    %s262 = int_to_ptr.vmem [resolvable:$true] %s261
    %264 = dma.hbm_to_vmem [thread:$0]  %s251, 16, %s262, %s253
    %s265 = sadd.s32 %s12, 29
    %s266 = sld [smem:[#allocation5 + %s265]]
    %s267 = smul.addr %s266, 16
    %s268 = scalar_lea.hbm %s1, %s267
    %s269 = scalar_lea.vmem [#allocation2], 15
    %s270 = scalar_lea.sflag [#allocation3], 15
    // Predicated region
    $region62: #{tpu_custom_call.1} parent=1 // pred_check
      _
    $region63: #{tpu_custom_call.1} parent=1 // pred_check_branch
      %272 = sbr.rel target = $region65
    $region64: #{tpu_custom_call.1} parent=1 // pred_region
      %273 = sst [smem:[#allocation10]] [#allocation41]
      %274 = sst [smem:[#allocation11]] [#allocation40]
    $region65: #{tpu_custom_call.1} parent=1 // pred_fallthru
      _
    %276 = shalt.err (0)
    %s278 = sshll.u32 %s269, 4
    %s279 = int_to_ptr.vmem [resolvable:$true] %s278
    %281 = dma.hbm_to_vmem [thread:$0]  %s268, 16, %s279, %s270
    %s282 = sadd.s32 %s12, 2
    %s283 = sld [smem:[#allocation5 + %s282]]
    %s284 = smul.addr %s283, 16
    %s285 = scalar_lea.hbm %s1, %s284
    %s286 = scalar_lea.vmem [#allocation2], 16
    %s287 = scalar_lea.sflag [#allocation3], 16
    // Predicated region
    $region66: #{tpu_custom_call.1} parent=1 // pred_check
      _
    $region67: #{tpu_custom_call.1} parent=1 // pred_check_branch
      %289 = sbr.rel target = $region69
    $region68: #{tpu_custom_call.1} parent=1 // pred_region
      %290 = sst [smem:[#allocation10]] [#allocation43]
      %291 = sst [smem:[#allocation11]] [#allocation42]
    $region69: #{tpu_custom_call.1} parent=1 // pred_fallthru
      _
    %293 = shalt.err (0)
    %s295 = sshll.u32 %s286, 4
    %s296 = int_to_ptr.vmem [resolvable:$true] %s295
    %298 = dma.hbm_to_vmem [thread:$0]  %s285, 16, %s296, %s287
    %s299 = sadd.s32 %s12, 6
    %s300 = sld [smem:[#allocation5 + %s299]]
    %s301 = smul.addr %s300, 16
    %s302 = scalar_lea.hbm %s1, %s301
    %s303 = scalar_lea.vmem [#allocation2], 17
    %s304 = scalar_lea.sflag [#allocation3], 17
    // Predicated region
    $region70: #{tpu_custom_call.1} parent=1 // pred_check
      _
    $region71: #{tpu_custom_call.1} parent=1 // pred_check_branch
      %306 = sbr.rel target = $region73
    $region72: #{tpu_custom_call.1} parent=1 // pred_region
      %307 = sst [smem:[#allocation10]] [#allocation45]
      %308 = sst [smem:[#allocation11]] [#allocation44]
    $region73: #{tpu_custom_call.1} parent=1 // pred_fallthru
      _
    %310 = shalt.err (0)
    %s312 = sshll.u32 %s303, 4
    %s313 = int_to_ptr.vmem [resolvable:$true] %s312
    %315 = dma.hbm_to_vmem [thread:$0]  %s302, 16, %s313, %s304
    %s316 = sadd.s32 %s12, 10
    %s317 = sld [smem:[#allocation5 + %s316]]
    %s318 = smul.addr %s317, 16
    %s319 = scalar_lea.hbm %s1, %s318
    %s320 = scalar_lea.vmem [#allocation2], 18
    %s321 = scalar_lea.sflag [#allocation3], 18
    // Predicated region
    $region74: #{tpu_custom_call.1} parent=1 // pred_check
      _
    $region75: #{tpu_custom_call.1} parent=1 // pred_check_branch
      %323 = sbr.rel target = $region77
    $region76: #{tpu_custom_call.1} parent=1 // pred_region
      %324 = sst [smem:[#allocation10]] [#allocation47]
      %325 = sst [smem:[#allocation11]] [#allocation46]
    $region77: #{tpu_custom_call.1} parent=1 // pred_fallthru
      _
    %327 = shalt.err (0)
    %s329 = sshll.u32 %s320, 4
    %s330 = int_to_ptr.vmem [resolvable:$true] %s329
    %332 = dma.hbm_to_vmem [thread:$0]  %s319, 16, %s330, %s321
    %s333 = sadd.s32 %s12, 14
    %s334 = sld [smem:[#allocation5 + %s333]]
    %s335 = smul.addr %s334, 16
    %s336 = scalar_lea.hbm %s1, %s335
    %s337 = scalar_lea.vmem [#allocation2], 19
    %s338 = scalar_lea.sflag [#allocation3], 19
    // Predicated region
    $region78: #{tpu_custom_call.1} parent=1 // pred_check
      _
    $region79: #{tpu_custom_call.1} parent=1 // pred_check_branch
      %340 = sbr.rel target = $region81
    $region80: #{tpu_custom_call.1} parent=1 // pred_region
      %341 = sst [smem:[#allocation10]] [#allocation49]
      %342 = sst [smem:[#allocation11]] [#allocation48]
    $region81: #{tpu_custom_call.1} parent=1 // pred_fallthru
      _
    %344 = shalt.err (0)
    %s346 = sshll.u32 %s337, 4
    %s347 = int_to_ptr.vmem [resolvable:$true] %s346
    %349 = dma.hbm_to_vmem [thread:$0]  %s336, 16, %s347, %s338
    %s350 = sadd.s32 %s12, 18
    %s351 = sld [smem:[#allocation5 + %s350]]
    %s352 = smul.addr %s351, 16
    %s353 = scalar_lea.hbm %s1, %s352
    %s354 = scalar_lea.vmem [#allocation2], 20
    %s355 = scalar_lea.sflag [#allocation3], 20
    // Predicated region
    $region82: #{tpu_custom_call.1} parent=1 // pred_check
      _
    $region83: #{tpu_custom_call.1} parent=1 // pred_check_branch
      %357 = sbr.rel target = $region85
    $region84: #{tpu_custom_call.1} parent=1 // pred_region
      %358 = sst [smem:[#allocation10]] [#allocation51]
      %359 = sst [smem:[#allocation11]] [#allocation50]
    $region85: #{tpu_custom_call.1} parent=1 // pred_fallthru
      _
    %361 = shalt.err (0)
    %s363 = sshll.u32 %s354, 4
    %s364 = int_to_ptr.vmem [resolvable:$true] %s363
    %366 = dma.hbm_to_vmem [thread:$0]  %s353, 16, %s364, %s355
    %s367 = sadd.s32 %s12, 22
    %s368 = sld [smem:[#allocation5 + %s367]]
    %s369 = smul.addr %s368, 16
    %s370 = scalar_lea.hbm %s1, %s369
    %s371 = scalar_lea.vmem [#allocation2], 21
    %s372 = scalar_lea.sflag [#allocation3], 21
    // Predicated region
    $region86: #{tpu_custom_call.1} parent=1 // pred_check
      _
    $region87: #{tpu_custom_call.1} parent=1 // pred_check_branch
      %374 = sbr.rel target = $region89
    $region88: #{tpu_custom_call.1} parent=1 // pred_region
      %375 = sst [smem:[#allocation10]] [#allocation53]
      %376 = sst [smem:[#allocation11]] [#allocation52]
    $region89: #{tpu_custom_call.1} parent=1 // pred_fallthru
      _
    %378 = shalt.err (0)
    %s380 = sshll.u32 %s371, 4
    %s381 = int_to_ptr.vmem [resolvable:$true] %s380
    %383 = dma.hbm_to_vmem [thread:$0]  %s370, 16, %s381, %s372
    %s384 = sadd.s32 %s12, 26
    %s385 = sld [smem:[#allocation5 + %s384]]
    %s386 = smul.addr %s385, 16
    %s387 = scalar_lea.hbm %s1, %s386
    %s388 = scalar_lea.vmem [#allocation2], 22
    %s389 = scalar_lea.sflag [#allocation3], 22
    // Predicated region
    $region90: #{tpu_custom_call.1} parent=1 // pred_check
      _
    $region91: #{tpu_custom_call.1} parent=1 // pred_check_branch
      %391 = sbr.rel target = $region93
    $region92: #{tpu_custom_call.1} parent=1 // pred_region
      %392 = sst [smem:[#allocation10]] [#allocation55]
      %393 = sst [smem:[#allocation11]] [#allocation54]
    $region93: #{tpu_custom_call.1} parent=1 // pred_fallthru
      _
    %395 = shalt.err (0)
    %s397 = sshll.u32 %s388, 4
    %s398 = int_to_ptr.vmem [resolvable:$true] %s397
    %400 = dma.hbm_to_vmem [thread:$0]  %s387, 16, %s398, %s389
    %s401 = sadd.s32 %s12, 30
    %s402 = sld [smem:[#allocation5 + %s401]]
    %s403 = smul.addr %s402, 16
    %s404 = scalar_lea.hbm %s1, %s403
    %s405 = scalar_lea.vmem [#allocation2], 23
    %s406 = scalar_lea.sflag [#allocation3], 23
    // Predicated region
    $region94: #{tpu_custom_call.1} parent=1 // pred_check
      _
    $region95: #{tpu_custom_call.1} parent=1 // pred_check_branch
      %408 = sbr.rel target = $region97
    $region96: #{tpu_custom_call.1} parent=1 // pred_region
      %409 = sst [smem:[#allocation10]] [#allocation57]
      %410 = sst [smem:[#allocation11]] [#allocation56]
    $region97: #{tpu_custom_call.1} parent=1 // pred_fallthru
      _
    %412 = shalt.err (0)
    %s414 = sshll.u32 %s405, 4
    %s415 = int_to_ptr.vmem [resolvable:$true] %s414
    %417 = dma.hbm_to_vmem [thread:$0]  %s404, 16, %s415, %s406
    %s418 = sadd.s32 %s12, 3
    %s419 = sld [smem:[#allocation5 + %s418]]
    %s420 = smul.addr %s419, 16
    %s421 = scalar_lea.hbm %s1, %s420
    %s422 = scalar_lea.vmem [#allocation2], 24
    %s423 = scalar_lea.sflag [#allocation3], 24
    // Predicated region
    $region98: #{tpu_custom_call.1} parent=1 // pred_check
      _
    $region99: #{tpu_custom_call.1} parent=1 // pred_check_branch
      %425 = sbr.rel target = $region101
    $region100: #{tpu_custom_call.1} parent=1 // pred_region
      %426 = sst [smem:[#allocation10]] [#allocation59]
      %427 = sst [smem:[#allocation11]] [#allocation58]
    $region101: #{tpu_custom_call.1} parent=1 // pred_fallthru
      _
    %429 = shalt.err (0)
    %s431 = sshll.u32 %s422, 4
    %s432 = int_to_ptr.vmem [resolvable:$true] %s431
    %434 = dma.hbm_to_vmem [thread:$0]  %s421, 16, %s432, %s423
    %s435 = sadd.s32 %s12, 7
    %s436 = sld [smem:[#allocation5 + %s435]]
    %s437 = smul.addr %s436, 16
    %s438 = scalar_lea.hbm %s1, %s437
    %s439 = scalar_lea.vmem [#allocation2], 25
    %s440 = scalar_lea.sflag [#allocation3], 25
    // Predicated region
    $region102: #{tpu_custom_call.1} parent=1 // pred_check
      _
    $region103: #{tpu_custom_call.1} parent=1 // pred_check_branch
      %442 = sbr.rel target = $region105
    $region104: #{tpu_custom_call.1} parent=1 // pred_region
      %443 = sst [smem:[#allocation10]] [#allocation61]
      %444 = sst [smem:[#allocation11]] [#allocation60]
    $region105: #{tpu_custom_call.1} parent=1 // pred_fallthru
      _
    %446 = shalt.err (0)
    %s448 = sshll.u32 %s439, 4
    %s449 = int_to_ptr.vmem [resolvable:$true] %s448
    %451 = dma.hbm_to_vmem [thread:$0]  %s438, 16, %s449, %s440
    %s452 = sadd.s32 %s12, 11
    %s453 = sld [smem:[#allocation5 + %s452]]
    %s454 = smul.addr %s453, 16
    %s455 = scalar_lea.hbm %s1, %s454
    %s456 = scalar_lea.vmem [#allocation2], 26
    %s457 = scalar_lea.sflag [#allocation3], 26
    // Predicated region
    $region106: #{tpu_custom_call.1} parent=1 // pred_check
      _
    $region107: #{tpu_custom_call.1} parent=1 // pred_check_branch
      %459 = sbr.rel target = $region109
    $region108: #{tpu_custom_call.1} parent=1 // pred_region
      %460 = sst [smem:[#allocation10]] [#allocation63]
      %461 = sst [smem:[#allocation11]] [#allocation62]
    $region109: #{tpu_custom_call.1} parent=1 // pred_fallthru
      _
    %463 = shalt.err (0)
    %s465 = sshll.u32 %s456, 4
    %s466 = int_to_ptr.vmem [resolvable:$true] %s465
    %468 = dma.hbm_to_vmem [thread:$0]  %s455, 16, %s466, %s457
    %s469 = sadd.s32 %s12, 15
    %s470 = sld [smem:[#allocation5 + %s469]]
    %s471 = smul.addr %s470, 16
    %s472 = scalar_lea.hbm %s1, %s471
    %s473 = scalar_lea.vmem [#allocation2], 27
    %s474 = scalar_lea.sflag [#allocation3], 27
    // Predicated region
    $region110: #{tpu_custom_call.1} parent=1 // pred_check
      _
    $region111: #{tpu_custom_call.1} parent=1 // pred_check_branch
      %476 = sbr.rel target = $region113
    $region112: #{tpu_custom_call.1} parent=1 // pred_region
      %477 = sst [smem:[#allocation10]] [#allocation65]
      %478 = sst [smem:[#allocation11]] [#allocation64]
    $region113: #{tpu_custom_call.1} parent=1 // pred_fallthru
      _
    %480 = shalt.err (0)
    %s482 = sshll.u32 %s473, 4
    %s483 = int_to_ptr.vmem [resolvable:$true] %s482
    %485 = dma.hbm_to_vmem [thread:$0]  %s472, 16, %s483, %s474
    %s486 = sadd.s32 %s12, 19
    %s487 = sld [smem:[#allocation5 + %s486]]
    %s488 = smul.addr %s487, 16
    %s489 = scalar_lea.hbm %s1, %s488
    %s490 = scalar_lea.vmem [#allocation2], 28
    %s491 = scalar_lea.sflag [#allocation3], 28
    // Predicated region
    $region114: #{tpu_custom_call.1} parent=1 // pred_check
      _
    $region115: #{tpu_custom_call.1} parent=1 // pred_check_branch
      %493 = sbr.rel target = $region117
    $region116: #{tpu_custom_call.1} parent=1 // pred_region
      %494 = sst [smem:[#allocation10]] [#allocation67]
      %495 = sst [smem:[#allocation11]] [#allocation66]
    $region117: #{tpu_custom_call.1} parent=1 // pred_fallthru
      _
    %497 = shalt.err (0)
    %s499 = sshll.u32 %s490, 4
    %s500 = int_to_ptr.vmem [resolvable:$true] %s499
    %502 = dma.hbm_to_vmem [thread:$0]  %s489, 16, %s500, %s491
    %s503 = sadd.s32 %s12, 23
    %s504 = sld [smem:[#allocation5 + %s503]]
    %s505 = smul.addr %s504, 16
    %s506 = scalar_lea.hbm %s1, %s505
    %s507 = scalar_lea.vmem [#allocation2], 29
    %s508 = scalar_lea.sflag [#allocation3], 29
    // Predicated region
    $region118: #{tpu_custom_call.1} parent=1 // pred_check
      _
    $region119: #{tpu_custom_call.1} parent=1 // pred_check_branch
      %510 = sbr.rel target = $region121
    $region120: #{tpu_custom_call.1} parent=1 // pred_region
      %511 = sst [smem:[#allocation10]] [#allocation69]
      %512 = sst [smem:[#allocation11]] [#allocation68]
    $region121: #{tpu_custom_call.1} parent=1 // pred_fallthru
      _
    %514 = shalt.err (0)
    %s516 = sshll.u32 %s507, 4
    %s517 = int_to_ptr.vmem [resolvable:$true] %s516
    %519 = dma.hbm_to_vmem [thread:$0]  %s506, 16, %s517, %s508
    %s520 = sadd.s32 %s12, 27
    %s521 = sld [smem:[#allocation5 + %s520]]
    %s522 = smul.addr %s521, 16
    %s523 = scalar_lea.hbm %s1, %s522
    %s524 = scalar_lea.vmem [#allocation2], 30
    %s525 = scalar_lea.sflag [#allocation3], 30
    // Predicated region
    $region122: #{tpu_custom_call.1} parent=1 // pred_check
      _
    $region123: #{tpu_custom_call.1} parent=1 // pred_check_branch
      %527 = sbr.rel target = $region125
    $region124: #{tpu_custom_call.1} parent=1 // pred_region
      %528 = sst [smem:[#allocation10]] [#allocation71]
      %529 = sst [smem:[#allocation11]] [#allocation70]
    $region125: #{tpu_custom_call.1} parent=1 // pred_fallthru
      _
    %531 = shalt.err (0)
    %s533 = sshll.u32 %s524, 4
    %s534 = int_to_ptr.vmem [resolvable:$true] %s533
    %536 = dma.hbm_to_vmem [thread:$0]  %s523, 16, %s534, %s525
    %s537 = sadd.s32 %s12, 31
    %s538 = sld [smem:[#allocation5 + %s537]]
    %s539 = smul.addr %s538, 16
    %s540 = scalar_lea.hbm %s1, %s539
    %s541 = scalar_lea.vmem [#allocation2], 31
    %s542 = scalar_lea.sflag [#allocation3], 31
    // Predicated region
    $region126: #{tpu_custom_call.1} parent=1 // pred_check
      _
    $region127: #{tpu_custom_call.1} parent=1 // pred_check_branch
      %544 = sbr.rel target = $region129
    $region128: #{tpu_custom_call.1} parent=1 // pred_region
      %545 = sst [smem:[#allocation10]] [#allocation73]
      %546 = sst [smem:[#allocation11]] [#allocation72]
    $region129: #{tpu_custom_call.1} parent=1 // pred_fallthru
      _
    %548 = shalt.err (0)
    %s550 = sshll.u32 %s541, 4
    %s551 = int_to_ptr.vmem [resolvable:$true] %s550
    %553 = dma.hbm_to_vmem [thread:$0]  %s540, 16, %s551, %s542
    %s554 = smul.u32 1, 1
    %s555 = sshll.u32 %s554, 4
    %556 = dma.done [#allocation3], %s555
    %s557 = sshll.u32 %s554, 4
    %558 = dma.done %s32, %s557
    %s559 = sshll.u32 %s554, 4
    %560 = dma.done %s49, %s559
    %s561 = sshll.u32 %s554, 4
    %562 = dma.done %s66, %s561
    %s563 = sshll.u32 %s554, 4
    %564 = dma.done %s83, %s563
    %s565 = sshll.u32 %s554, 4
    %566 = dma.done %s100, %s565
    %s567 = sshll.u32 %s554, 4
    %568 = dma.done %s117, %s567
    %s569 = sshll.u32 %s554, 4
    %570 = dma.done %s134, %s569
    %s571 = sshll.u32 %s554, 4
    %572 = dma.done %s151, %s571
    %s573 = sshll.u32 %s554, 4
    %574 = dma.done %s168, %s573
    %s575 = sshll.u32 %s554, 4
    %576 = dma.done %s185, %s575
    %s577 = sshll.u32 %s554, 4
    %578 = dma.done %s202, %s577
    %s579 = sshll.u32 %s554, 4
    %580 = dma.done %s219, %s579
    %s581 = sshll.u32 %s554, 4
    %582 = dma.done %s236, %s581
    %s583 = sshll.u32 %s554, 4
    %584 = dma.done %s253, %s583
    %s585 = sshll.u32 %s554, 4
    %586 = dma.done %s270, %s585
    %s587 = sshll.u32 %s554, 4
    %588 = dma.done %s287, %s587
    %s589 = sshll.u32 %s554, 4
    %590 = dma.done %s304, %s589
    %s591 = sshll.u32 %s554, 4
    %592 = dma.done %s321, %s591
    %s593 = sshll.u32 %s554, 4
    %594 = dma.done %s338, %s593
    %s595 = sshll.u32 %s554, 4
    %596 = dma.done %s355, %s595
    %s597 = sshll.u32 %s554, 4
    %598 = dma.done %s372, %s597
    %s599 = sshll.u32 %s554, 4
    %600 = dma.done %s389, %s599
    %s601 = sshll.u32 %s554, 4
    %602 = dma.done %s406, %s601
    %s603 = sshll.u32 %s554, 4
    %604 = dma.done %s423, %s603
    %s605 = sshll.u32 %s554, 4
    %606 = dma.done %s440, %s605
    %s607 = sshll.u32 %s554, 4
    %608 = dma.done %s457, %s607
    %s609 = sshll.u32 %s554, 4
    %610 = dma.done %s474, %s609
    %s611 = sshll.u32 %s554, 4
    %612 = dma.done %s491, %s611
    %s613 = sshll.u32 %s554, 4
    %614 = dma.done %s508, %s613
    %s615 = sshll.u32 %s554, 4
    %616 = dma.done %s525, %s615
    %s617 = sshll.u32 %s554, 4
    %618 = dma.done %s542, %s617
    %v619 = vld [vmem:[#allocation2] sm:$0xff]
    %v620 = vld [vmem:[#allocation2 + $0x8] sm:$0xff]
    %v621 = vadd.f32 %v619, %v620
    %v622 = vld [vmem:[#allocation2 + $0x10] sm:$0xff]
    %v623 = vadd.f32 %v621, %v622
    %v624 = vld [vmem:[#allocation2 + $0x18] sm:$0xff]
    %v625 = vadd.f32 %v623, %v624
    %v626 = vmul.f32 %v625, 0.25
    %627 = vst [vmem:[#allocation6] sm:$0xff] %v626
    // Predicated region
    $region130: #{tpu_custom_call.1} parent=1 // pred_check
      _
    $region131: #{tpu_custom_call.1} parent=1 // pred_check_branch
      %629 = sbr.rel (0) target = $region133
    $region132: #{tpu_custom_call.1} parent=1 // pred_region
      %s631 = ssub.s32 128, 128
      %632 = vsyncadd [#allocation7], %s631
      %s634 = sshll.u32 [#allocation6], 4
      %s635 = int_to_ptr.vmem [resolvable:$true] %s634
      %637 = dma.vmem_to_hbm [thread:$0]  %s635, 128, %s2, [#allocation7]
    $region133: #{tpu_custom_call.1} parent=1 // pred_fallthru
      _
    // Predicated region
    $region134: #{tpu_custom_call.1} parent=1 // pred_check
      _
    $region135: #{tpu_custom_call.1} parent=1 // pred_check_branch
      %639 = sbr.rel (0) target = $region137
    $region136: #{tpu_custom_call.1} parent=1 // pred_region
      %640 = dma.done [#allocation7], 128
    $region137: #{tpu_custom_call.1} parent=1 // pred_fallthru
      _
    %641 = vsyncpa [#allocation7], 1
  %642 = vsyncmov [#allocation3]
  %s643 = vpop.sfrf %642
  %p644 = scmp.eq.s32.totalorder %s643, 0
  %p645 = pneg %p644
  %647 = shalt.err (%p645)
  %s648 = scalar_lea.sflag [#allocation3], 1
  %649 = vsyncmov %s648
  %s650 = vpop.sfrf %649
  %p651 = scmp.eq.s32.totalorder %s650, 0
  %p652 = pneg %p651
  %654 = shalt.err (%p652)
  %s655 = scalar_lea.sflag [#allocation3], 2
  %656 = vsyncmov %s655
  %s657 = vpop.sfrf %656
  %p658 = scmp.eq.s32.totalorder %s657, 0
  %p659 = pneg %p658
  %661 = shalt.err (%p659)
  %s662 = scalar_lea.sflag [#allocation3], 3
  %663 = vsyncmov %s662
  %s664 = vpop.sfrf %663
  %p665 = scmp.eq.s32.totalorder %s664, 0
  %p666 = pneg %p665
  %668 = shalt.err (%p666)
  %s669 = scalar_lea.sflag [#allocation3], 4
  %670 = vsyncmov %s669
  %s671 = vpop.sfrf %670
  %p672 = scmp.eq.s32.totalorder %s671, 0
  %p673 = pneg %p672
  %675 = shalt.err (%p673)
  %s676 = scalar_lea.sflag [#allocation3], 5
  %677 = vsyncmov %s676
  %s678 = vpop.sfrf %677
  %p679 = scmp.eq.s32.totalorder %s678, 0
  %p680 = pneg %p679
  %682 = shalt.err (%p680)
  %s683 = scalar_lea.sflag [#allocation3], 6
  %684 = vsyncmov %s683
  %s685 = vpop.sfrf %684
  %p686 = scmp.eq.s32.totalorder %s685, 0
  %p687 = pneg %p686
  %689 = shalt.err (%p687)
  %s690 = scalar_lea.sflag [#allocation3], 7
  %691 = vsyncmov %s690
  %s692 = vpop.sfrf %691
  %p693 = scmp.eq.s32.totalorder %s692, 0
  %p694 = pneg %p693
  %696 = shalt.err (%p694)
  %s697 = scalar_lea.sflag [#allocation3], 8
  %698 = vsyncmov %s697
  %s699 = vpop.sfrf %698
  %p700 = scmp.eq.s32.totalorder %s699, 0
  %p701 = pneg %p700
  %703 = shalt.err (%p701)
  %s704 = scalar_lea.sflag [#allocation3], 9
  %705 = vsyncmov %s704
  %s706 = vpop.sfrf %705
  %p707 = scmp.eq.s32.totalorder %s706, 0
  %p708 = pneg %p707
  %710 = shalt.err (%p708)
  %s711 = scalar_lea.sflag [#allocation3], 10
  %712 = vsyncmov %s711
  %s713 = vpop.sfrf %712
  %p714 = scmp.eq.s32.totalorder %s713, 0
  %p715 = pneg %p714
  %717 = shalt.err (%p715)
  %s718 = scalar_lea.sflag [#allocation3], 11
  %719 = vsyncmov %s718
  %s720 = vpop.sfrf %719
  %p721 = scmp.eq.s32.totalorder %s720, 0
  %p722 = pneg %p721
  %724 = shalt.err (%p722)
  %s725 = scalar_lea.sflag [#allocation3], 12
  %726 = vsyncmov %s725
  %s727 = vpop.sfrf %726
  %p728 = scmp.eq.s32.totalorder %s727, 0
  %p729 = pneg %p728
  %731 = shalt.err (%p729)
  %s732 = scalar_lea.sflag [#allocation3], 13
  %733 = vsyncmov %s732
  %s734 = vpop.sfrf %733
  %p735 = scmp.eq.s32.totalorder %s734, 0
  %p736 = pneg %p735
  %738 = shalt.err (%p736)
  %s739 = scalar_lea.sflag [#allocation3], 14
  %740 = vsyncmov %s739
  %s741 = vpop.sfrf %740
  %p742 = scmp.eq.s32.totalorder %s741, 0
  %p743 = pneg %p742
  %745 = shalt.err (%p743)
  %s746 = scalar_lea.sflag [#allocation3], 15
  %747 = vsyncmov %s746
  %s748 = vpop.sfrf %747
  %p749 = scmp.eq.s32.totalorder %s748, 0
  %p750 = pneg %p749
  %752 = shalt.err (%p750)
  %s753 = scalar_lea.sflag [#allocation3], 16
  %754 = vsyncmov %s753
  %s755 = vpop.sfrf %754
  %p756 = scmp.eq.s32.totalorder %s755, 0
  %p757 = pneg %p756
  %759 = shalt.err (%p757)
  %s760 = scalar_lea.sflag [#allocation3], 17
  %761 = vsyncmov %s760
  %s762 = vpop.sfrf %761
  %p763 = scmp.eq.s32.totalorder %s762, 0
  %p764 = pneg %p763
  %766 = shalt.err (%p764)
  %s767 = scalar_lea.sflag [#allocation3], 18
  %768 = vsyncmov %s767
  %s769 = vpop.sfrf %768
  %p770 = scmp.eq.s32.totalorder %s769, 0
  %p771 = pneg %p770
  %773 = shalt.err (%p771)
  %s774 = scalar_lea.sflag [#allocation3], 19
  %775 = vsyncmov %s774
  %s776 = vpop.sfrf %775
  %p777 = scmp.eq.s32.totalorder %s776, 0
  %p778 = pneg %p777
  %780 = shalt.err (%p778)
  %s781 = scalar_lea.sflag [#allocation3], 20
  %782 = vsyncmov %s781
  %s783 = vpop.sfrf %782
  %p784 = scmp.eq.s32.totalorder %s783, 0
  %p785 = pneg %p784
  %787 = shalt.err (%p785)
  %s788 = scalar_lea.sflag [#allocation3], 21
  %789 = vsyncmov %s788
  %s790 = vpop.sfrf %789
  %p791 = scmp.eq.s32.totalorder %s790, 0
  %p792 = pneg %p791
  %794 = shalt.err (%p792)
  %s795 = scalar_lea.sflag [#allocation3], 22
  %796 = vsyncmov %s795
  %s797 = vpop.sfrf %796
  %p798 = scmp.eq.s32.totalorder %s797, 0
  %p799 = pneg %p798
  %801 = shalt.err (%p799)
  %s802 = scalar_lea.sflag [#allocation3], 23
  %803 = vsyncmov %s802
  %s804 = vpop.sfrf %803
  %p805 = scmp.eq.s32.totalorder %s804, 0
  %p806 = pneg %p805
  %808 = shalt.err (%p806)
  %s809 = scalar_lea.sflag [#allocation3], 24
  %810 = vsyncmov %s809
  %s811 = vpop.sfrf %810
  %p812 = scmp.eq.s32.totalorder %s811, 0
  %p813 = pneg %p812
  %815 = shalt.err (%p813)
  %s816 = scalar_lea.sflag [#allocation3], 25
  %817 = vsyncmov %s816
  %s818 = vpop.sfrf %817
  %p819 = scmp.eq.s32.totalorder %s818, 0
  %p820 = pneg %p819
  %822 = shalt.err (%p820)
  %s823 = scalar_lea.sflag [#allocation3], 26
  %824 = vsyncmov %s823
  %s825 = vpop.sfrf %824
  %p826 = scmp.eq.s32.totalorder %s825, 0
  %p827 = pneg %p826
  %829 = shalt.err (%p827)
  %s830 = scalar_lea.sflag [#allocation3], 27
  %831 = vsyncmov %s830
  %s832 = vpop.sfrf %831
  %p833 = scmp.eq.s32.totalorder %s832, 0
  %p834 = pneg %p833
  %836 = shalt.err (%p834)
  %s837 = scalar_lea.sflag [#allocation3], 28
  %838 = vsyncmov %s837
  %s839 = vpop.sfrf %838
  %p840 = scmp.eq.s32.totalorder %s839, 0
  %p841 = pneg %p840
  %843 = shalt.err (%p841)
  %s844 = scalar_lea.sflag [#allocation3], 29
  %845 = vsyncmov %s844
  %s846 = vpop.sfrf %845
  %p847 = scmp.eq.s32.totalorder %s846, 0
  %p848 = pneg %p847
  %850 = shalt.err (%p848)
  %s851 = scalar_lea.sflag [#allocation3], 30
  %852 = vsyncmov %s851
  %s853 = vpop.sfrf %852
  %p854 = scmp.eq.s32.totalorder %s853, 0
  %p855 = pneg %p854
  %857 = shalt.err (%p855)
  %s858 = scalar_lea.sflag [#allocation3], 31
  %859 = vsyncmov %s858
  %s860 = vpop.sfrf %859
  %p861 = scmp.eq.s32.totalorder %s860, 0
  %p862 = pneg %p861
  %864 = shalt.err (%p862)

</llo_original>
